<compile_context>
chip_gen: v6e
topology: v6e:2x2x1
jax: 0.10.0
libtpu: 0.0.40
codegen_flags: <defaults>
</compile_context>

<pallas_src>
import jax
import jax.numpy as jnp
from jax import lax
from jax.experimental import pallas as pl
from jax.experimental.pallas import tpu as pltpu


def gru_net_kernel(b_out_ref, x_ref, w_ih_ref, b_ih_ref, w_hh_ref, b_hh_ref,
                   w_out_ref, out_ref, hs_ref):
    """Single-call kernel: full GRU recurrence + hoisted output head.

    b_out_ref:  (1, 1)     f32  SMEM  (output-layer bias, read once)
    x_ref:      (T, 1, B)  f32  VMEM  (inputs, B on lanes)
    w_ih_ref:   (3H, 1)    f32  VMEM  (W_ih as stored by PyTorch, input_size=1)
    b_ih_ref:   (3H, 1)    f32  VMEM  (b_ih + input_bias * w_ih, pre-folded)
    w_hh_ref:   (3H, H)    f32  VMEM  (W_hh as stored by PyTorch, no transpose)
    b_hh_ref:   (3H, 1)    f32  VMEM
    w_out_ref:  (H, 1)     f32  VMEM  (output weight, column layout)
    out_ref:    (T, B)     f32  VMEM  (sigmoid(logits))
    hs_ref:     (T, H, B)  f32  VMEM scratch (hidden states, consumed by head)
    """
    T = x_ref.shape[0]
    B = x_ref.shape[2]
    H = w_hh_ref.shape[1]

    w_hh = w_hh_ref[...]                     # (3H, H)
    b_hh = b_hh_ref[...]                     # (3H, 1)

    # Precompute the input transform for all timesteps (vectorized over T,
    # off the serial critical path). input_size == 1 => outer product.
    # (T,1,B) * (3H,1) + (3H,1)  ->  (T, 3H, B)
    gi_all = x_ref[...] * w_ih_ref[...] + b_ih_ref[...]

    # Fully-unrolled recurrence: body is matmul + gates + state update only.
    h = jnp.zeros((H, B), dtype=jnp.float32)
    for t in range(T):
        gi = gi_all[t]                                            # (3H, B)
        gh = jnp.dot(w_hh, h,
                     preferred_element_type=jnp.float32) + b_hh   # (3H, B)
        # Gate slices are static sublane slices at offsets 0, H, 2H.
        r = jax.nn.sigmoid(gi[0:H] + gh[0:H])
        z = jax.nn.sigmoid(gi[H:2 * H] + gh[H:2 * H])
        n = jnp.tanh(gi[2 * H:3 * H] + r * gh[2 * H:3 * H])
        h = (1.0 - z) * n + z * h                                 # (H, B)
        hs_ref[t] = h

    # Output head hoisted out of the recurrence: Linear(H->1) + sigmoid over
    # all timesteps at once, one dense (T, B) store.
    hs = hs_ref[...]                                              # (T, H, B)
    logits = jnp.sum(hs * w_out_ref[...], axis=1) + b_out_ref[0, 0]  # (T, B)
    out_ref[...] = jax.nn.sigmoid(logits)


def network_forward(x, params):
    """x: (T, B, 1) float32, PyTorch nn.GRU default (seq, batch, input)."""
    T, B, I = x.shape
    assert I == 1
    H = params["w_hh"].shape[1]

    # Put batch on lanes: (T, B, 1) -> (T, 1, B).
    x_t1b = jnp.transpose(x, (0, 2, 1)).astype(jnp.float32)

    input_bias = params["input_bias"].astype(jnp.float32)
    w_ih = params["w_ih"].astype(jnp.float32)                         # (3H, 1)
    # Fold the scalar input bias into an effective input-to-hidden bias.
    b_ih_eff = (params["b_ih"].astype(jnp.float32)
                + input_bias * w_ih[:, 0])[:, None]                   # (3H, 1)
    w_hh = params["w_hh"].astype(jnp.float32)                         # (3H, H)
    b_hh = params["b_hh"].astype(jnp.float32)[:, None]                # (3H, 1)
    w_out = params["w_out"].astype(jnp.float32).T                     # (H, 1)
    b_out = jnp.reshape(params["b_out"], (1, 1)).astype(jnp.float32)  # (1, 1)

    smem = pl.BlockSpec(memory_space=pltpu.MemorySpace.SMEM)
    vmem = pl.BlockSpec(memory_space=pltpu.MemorySpace.VMEM)

    out_tb = pl.pallas_call(
        gru_net_kernel,
        out_shape=jax.ShapeDtypeStruct((T, B), jnp.float32),
        in_specs=[smem, vmem, vmem, vmem, vmem, vmem, vmem],
        out_specs=vmem,
        scratch_shapes=[pltpu.VMEM((T, H, B), jnp.float32)],
    )(b_out, x_t1b, w_ih, b_ih_eff, w_hh, b_hh, w_out)
    return out_tb[:, :, None]                                         # (T, B, 1)


def network_forward_ref(x, params):
    """Pure-JAX reference (same math as torch.nn.GRU + Linear + sigmoid)."""
    T, B, _ = x.shape
    H = params["w_hh"].shape[1]
    xi = x[:, :, 0] + params["input_bias"]                            # (T, B)
    w_ih_t = params["w_ih"].T                                         # (1, 3H)
    w_hh_t = params["w_hh"].T                                         # (H, 3H)
    b_ih, b_hh = params["b_ih"], params["b_hh"]

    def step(h, x_t):
        gi = x_t[:, None] @ w_ih_t + b_ih                             # (B, 3H)
        gh = h @ w_hh_t + b_hh                                        # (B, 3H)
        r = jax.nn.sigmoid(gi[:, :H] + gh[:, :H])
        z = jax.nn.sigmoid(gi[:, H:2 * H] + gh[:, H:2 * H])
        n = jnp.tanh(gi[:, 2 * H:] + r * gh[:, 2 * H:])
        h_new = (1.0 - z) * n + z * h
        return h_new, h_new

    h0 = jnp.zeros((B, H), jnp.float32)
    _, hs = lax.scan(step, h0, xi)                                    # (T, B, H)
    logits = hs @ params["w_out"].T + params["b_out"]                 # (T, B, 1)
    return jax.nn.sigmoid(logits)


def init_params(key, n_units):
    """Deterministic synthetic init matching Network.init_parameters shapes."""
    H = n_units
    std = float(1.0 / (H ** 0.5))
    ks = jax.random.split(key, 6)
    return dict(
        input_bias=jnp.float32(0.0),                                  # scalar param
        w_ih=jax.random.normal(ks[0], (3 * H, 1), jnp.float32) * std,
        w_hh=jax.random.normal(ks[1], (3 * H, H), jnp.float32) * std,
        b_ih=jax.random.uniform(ks[2], (3 * H,), jnp.float32, -std, std),
        b_hh=jax.random.uniform(ks[3], (3 * H,), jnp.float32, -std, std),
        w_out=jax.random.normal(ks[4], (1, H), jnp.float32) * std,
        b_out=jax.random.uniform(ks[5], (1,), jnp.float32, -std, std),
    )


if __name__ == "__main__":
    T, B, H = 8, 8, 32        # seq=8, batch=8, n_units=32, input_size=1
    key = jax.random.PRNGKey(0)
    k_x, k_p = jax.random.split(key)
    x = jax.random.normal(k_x, (T, B, 1), jnp.float32)
    params = init_params(k_p, H)

    out = network_forward(x, params)
    out = jax.block_until_ready(out)

    ref = network_forward_ref(x, params)
    assert out.shape == (T, B, 1)
    assert jnp.allclose(out, ref, atol=1e-5, rtol=1e-5), "kernel/reference mismatch"
    print("KERNEL_OK")
</pallas_src>

<mosaic_0001>
module attributes {stable_mosaic.version = 11 : i64} {
  func.func @gru_net_kernel(%arg0: memref<1x1xf32, #tpu.memory_space<smem>>, %arg1: memref<8x1x8xf32, #tpu.memory_space<vmem>>, %arg2: memref<96x1xf32, #tpu.memory_space<vmem>>, %arg3: memref<96x1xf32, #tpu.memory_space<vmem>>, %arg4: memref<96x32xf32, #tpu.memory_space<vmem>>, %arg5: memref<96x1xf32, #tpu.memory_space<vmem>>, %arg6: memref<32x1xf32, #tpu.memory_space<vmem>>, %arg7: memref<8x8xf32, #tpu.memory_space<vmem>>, %arg8: memref<8x32x8xf32, #tpu.memory_space<vmem>>) attributes {dimension_semantics = [], scalar_prefetch = 0 : i64, scratch_operands = 1 : i64, tpu.core_type = #tpu.core_type<tc>} {
    %c0 = arith.constant 0 : index
    %c0_0 = arith.constant 0 : index
    %0 = vector.load %arg4[%c0, %c0_0] : memref<96x32xf32, #tpu.memory_space<vmem>>, vector<96x32xf32>
    %c0_1 = arith.constant 0 : index
    %c0_2 = arith.constant 0 : index
    %1 = vector.load %arg5[%c0_1, %c0_2] : memref<96x1xf32, #tpu.memory_space<vmem>>, vector<96x1xf32>
    %c0_3 = arith.constant 0 : index
    %c0_4 = arith.constant 0 : index
    %c0_5 = arith.constant 0 : index
    %2 = vector.load %arg1[%c0_3, %c0_4, %c0_5] : memref<8x1x8xf32, #tpu.memory_space<vmem>>, vector<8x1x8xf32>
    %c0_6 = arith.constant 0 : index
    %c0_7 = arith.constant 0 : index
    %3 = vector.load %arg2[%c0_6, %c0_7] : memref<96x1xf32, #tpu.memory_space<vmem>>, vector<96x1xf32>
    %4 = vector.shape_cast %3 : vector<96x1xf32> to vector<1x96x1xf32>
    %5 = vector.broadcast %2 : vector<8x1x8xf32> to vector<8x96x8xf32>
    %6 = vector.broadcast %4 : vector<1x96x1xf32> to vector<8x96x8xf32>
    %7 = arith.mulf %5, %6 : vector<8x96x8xf32>
    %c0_8 = arith.constant 0 : index
    %c0_9 = arith.constant 0 : index
    %8 = vector.load %arg3[%c0_8, %c0_9] : memref<96x1xf32, #tpu.memory_space<vmem>>, vector<96x1xf32>
    %9 = vector.shape_cast %8 : vector<96x1xf32> to vector<1x96x1xf32>
    %10 = vector.broadcast %9 : vector<1x96x1xf32> to vector<8x96x8xf32>
    %11 = arith.addf %7, %10 : vector<8x96x8xf32>
    %cst = arith.constant 0.000000e+00 : f32
    %12 = vector.broadcast %cst : f32 to vector<32x8xf32>
    %13 = vector.extract_strided_slice %11 {offsets = [0, 0, 0], sizes = [1, 96, 8], strides = [1, 1, 1]} : vector<8x96x8xf32> to vector<1x96x8xf32>
    %14 = vector.shape_cast %13 : vector<1x96x8xf32> to vector<96x8xf32>
    %cst_10 = arith.constant dense<0.000000e+00> : vector<96x8xf32>
    %15 = tpu.matmul %0, %12, %cst_10 {dimension_numbers = #tpu.dot_dimension_numbers<[1], [0], [0], [1], [0, 0, 1, 1], [], []>} : vector<96x32xf32>, vector<32x8xf32>, vector<96x8xf32> -> vector<96x8xf32>
    %16 = vector.broadcast %1 : vector<96x1xf32> to vector<96x8xf32>
    %17 = arith.addf %15, %16 : vector<96x8xf32>
    %18 = vector.extract_strided_slice %14 {offsets = [0, 0], sizes = [32, 8], strides = [1, 1]} : vector<96x8xf32> to vector<32x8xf32>
    %19 = vector.extract_strided_slice %17 {offsets = [0, 0], sizes = [32, 8], strides = [1, 1]} : vector<96x8xf32> to vector<32x8xf32>
    %20 = arith.addf %18, %19 : vector<32x8xf32>
    %21 = arith.negf %20 : vector<32x8xf32>
    %22 = math.exp %21 : vector<32x8xf32>
    %cst_11 = arith.constant 1.000000e+00 : f32
    %23 = vector.broadcast %cst_11 : f32 to vector<32x8xf32>
    %24 = arith.addf %23, %22 : vector<32x8xf32>
    %25 = arith.divf %23, %24 : vector<32x8xf32>
    %26 = vector.extract_strided_slice %14 {offsets = [32, 0], sizes = [32, 8], strides = [1, 1]} : vector<96x8xf32> to vector<32x8xf32>
    %27 = vector.extract_strided_slice %17 {offsets = [32, 0], sizes = [32, 8], strides = [1, 1]} : vector<96x8xf32> to vector<32x8xf32>
    %28 = arith.addf %26, %27 : vector<32x8xf32>
    %29 = arith.negf %28 : vector<32x8xf32>
    %30 = math.exp %29 : vector<32x8xf32>
    %cst_12 = arith.constant 1.000000e+00 : f32
    %31 = vector.broadcast %cst_12 : f32 to vector<32x8xf32>
    %32 = arith.addf %31, %30 : vector<32x8xf32>
    %33 = arith.divf %31, %32 : vector<32x8xf32>
    %34 = vector.extract_strided_slice %14 {offsets = [64, 0], sizes = [32, 8], strides = [1, 1]} : vector<96x8xf32> to vector<32x8xf32>
    %35 = vector.extract_strided_slice %17 {offsets = [64, 0], sizes = [32, 8], strides = [1, 1]} : vector<96x8xf32> to vector<32x8xf32>
    %36 = arith.mulf %25, %35 : vector<32x8xf32>
    %37 = arith.addf %34, %36 : vector<32x8xf32>
    %38 = math.tanh %37 : vector<32x8xf32>
    %cst_13 = arith.constant 1.000000e+00 : f32
    %39 = vector.broadcast %cst_13 : f32 to vector<32x8xf32>
    %40 = arith.subf %39, %33 : vector<32x8xf32>
    %41 = arith.mulf %40, %38 : vector<32x8xf32>
    %42 = arith.mulf %33, %12 : vector<32x8xf32>
    %43 = arith.addf %41, %42 : vector<32x8xf32>
    %c0_14 = arith.constant 0 : index
    %c0_15 = arith.constant 0 : index
    %c0_16 = arith.constant 0 : index
    %44 = vector.load %arg8[%c0_14, %c0_15, %c0_16] : memref<8x32x8xf32, #tpu.memory_space<vmem>>, vector<1x32x8xf32>
    %45 = vector.shape_cast %44 : vector<1x32x8xf32> to vector<32x8xf32>
    %46 = vector.shape_cast %43 : vector<32x8xf32> to vector<1x32x8xf32>
    tpu.vector_store %arg8[%c0_14, %c0_15, %c0_16], %46 {strides = array<i32>} : memref<8x32x8xf32, #tpu.memory_space<vmem>>, vector<1x32x8xf32>,
    %47 = vector.extract_strided_slice %11 {offsets = [1, 0, 0], sizes = [1, 96, 8], strides = [1, 1, 1]} : vector<8x96x8xf32> to vector<1x96x8xf32>
    %48 = vector.shape_cast %47 : vector<1x96x8xf32> to vector<96x8xf32>
    %cst_17 = arith.constant dense<0.000000e+00> : vector<96x8xf32>
    %49 = tpu.matmul %0, %43, %cst_17 {dimension_numbers = #tpu.dot_dimension_numbers<[1], [0], [0], [1], [0, 0, 1, 1], [], []>} : vector<96x32xf32>, vector<32x8xf32>, vector<96x8xf32> -> vector<96x8xf32>
    %50 = vector.broadcast %1 : vector<96x1xf32> to vector<96x8xf32>
    %51 = arith.addf %49, %50 : vector<96x8xf32>
    %52 = vector.extract_strided_slice %48 {offsets = [0, 0], sizes = [32, 8], strides = [1, 1]} : vector<96x8xf32> to vector<32x8xf32>
    %53 = vector.extract_strided_slice %51 {offsets = [0, 0], sizes = [32, 8], strides = [1, 1]} : vector<96x8xf32> to vector<32x8xf32>
    %54 = arith.addf %52, %53 : vector<32x8xf32>
    %55 = arith.negf %54 : vector<32x8xf32>
    %56 = math.exp %55 : vector<32x8xf32>
    %cst_18 = arith.constant 1.000000e+00 : f32
    %57 = vector.broadcast %cst_18 : f32 to vector<32x8xf32>
    %58 = arith.addf %57, %56 : vector<32x8xf32>
    %59 = arith.divf %57, %58 : vector<32x8xf32>
    %60 = vector.extract_strided_slice %48 {offsets = [32, 0], sizes = [32, 8], strides = [1, 1]} : vector<96x8xf32> to vector<32x8xf32>
    %61 = vector.extract_strided_slice %51 {offsets = [32, 0], sizes = [32, 8], strides = [1, 1]} : vector<96x8xf32> to vector<32x8xf32>
    %62 = arith.addf %60, %61 : vector<32x8xf32>
    %63 = arith.negf %62 : vector<32x8xf32>
    %64 = math.exp %63 : vector<32x8xf32>
    %cst_19 = arith.constant 1.000000e+00 : f32
    %65 = vector.broadcast %cst_19 : f32 to vector<32x8xf32>
    %66 = arith.addf %65, %64 : vector<32x8xf32>
    %67 = arith.divf %65, %66 : vector<32x8xf32>
    %68 = vector.extract_strided_slice %48 {offsets = [64, 0], sizes = [32, 8], strides = [1, 1]} : vector<96x8xf32> to vector<32x8xf32>
    %69 = vector.extract_strided_slice %51 {offsets = [64, 0], sizes = [32, 8], strides = [1, 1]} : vector<96x8xf32> to vector<32x8xf32>
    %70 = arith.mulf %59, %69 : vector<32x8xf32>
    %71 = arith.addf %68, %70 : vector<32x8xf32>
    %72 = math.tanh %71 : vector<32x8xf32>
    %cst_20 = arith.constant 1.000000e+00 : f32
    %73 = vector.broadcast %cst_20 : f32 to vector<32x8xf32>
    %74 = arith.subf %73, %67 : vector<32x8xf32>
    %75 = arith.mulf %74, %72 : vector<32x8xf32>
    %76 = arith.mulf %67, %43 : vector<32x8xf32>
    %77 = arith.addf %75, %76 : vector<32x8xf32>
    %c1 = arith.constant 1 : index
    %c0_21 = arith.constant 0 : index
    %c0_22 = arith.constant 0 : index
    %78 = vector.load %arg8[%c1, %c0_21, %c0_22] : memref<8x32x8xf32, #tpu.memory_space<vmem>>, vector<1x32x8xf32>
    %79 = vector.shape_cast %78 : vector<1x32x8xf32> to vector<32x8xf32>
    %80 = vector.shape_cast %77 : vector<32x8xf32> to vector<1x32x8xf32>
    tpu.vector_store %arg8[%c1, %c0_21, %c0_22], %80 {strides = array<i32>} : memref<8x32x8xf32, #tpu.memory_space<vmem>>, vector<1x32x8xf32>,
    %81 = vector.extract_strided_slice %11 {offsets = [2, 0, 0], sizes = [1, 96, 8], strides = [1, 1, 1]} : vector<8x96x8xf32> to vector<1x96x8xf32>
    %82 = vector.shape_cast %81 : vector<1x96x8xf32> to vector<96x8xf32>
    %cst_23 = arith.constant dense<0.000000e+00> : vector<96x8xf32>
    %83 = tpu.matmul %0, %77, %cst_23 {dimension_numbers = #tpu.dot_dimension_numbers<[1], [0], [0], [1], [0, 0, 1, 1], [], []>} : vector<96x32xf32>, vector<32x8xf32>, vector<96x8xf32> -> vector<96x8xf32>
    %84 = vector.broadcast %1 : vector<96x1xf32> to vector<96x8xf32>
    %85 = arith.addf %83, %84 : vector<96x8xf32>
    %86 = vector.extract_strided_slice %82 {offsets = [0, 0], sizes = [32, 8], strides = [1, 1]} : vector<96x8xf32> to vector<32x8xf32>
    %87 = vector.extract_strided_slice %85 {offsets = [0, 0], sizes = [32, 8], strides = [1, 1]} : vector<96x8xf32> to vector<32x8xf32>
    %88 = arith.addf %86, %87 : vector<32x8xf32>
    %89 = arith.negf %88 : vector<32x8xf32>
    %90 = math.exp %89 : vector<32x8xf32>
    %cst_24 = arith.constant 1.000000e+00 : f32
    %91 = vector.broadcast %cst_24 : f32 to vector<32x8xf32>
    %92 = arith.addf %91, %90 : vector<32x8xf32>
    %93 = arith.divf %91, %92 : vector<32x8xf32>
    %94 = vector.extract_strided_slice %82 {offsets = [32, 0], sizes = [32, 8], strides = [1, 1]} : vector<96x8xf32> to vector<32x8xf32>
    %95 = vector.extract_strided_slice %85 {offsets = [32, 0], sizes = [32, 8], strides = [1, 1]} : vector<96x8xf32> to vector<32x8xf32>
    %96 = arith.addf %94, %95 : vector<32x8xf32>
    %97 = arith.negf %96 : vector<32x8xf32>
    %98 = math.exp %97 : vector<32x8xf32>
    %cst_25 = arith.constant 1.000000e+00 : f32
    %99 = vector.broadcast %cst_25 : f32 to vector<32x8xf32>
    %100 = arith.addf %99, %98 : vector<32x8xf32>
    %101 = arith.divf %99, %100 : vector<32x8xf32>
    %102 = vector.extract_strided_slice %82 {offsets = [64, 0], sizes = [32, 8], strides = [1, 1]} : vector<96x8xf32> to vector<32x8xf32>
    %103 = vector.extract_strided_slice %85 {offsets = [64, 0], sizes = [32, 8], strides = [1, 1]} : vector<96x8xf32> to vector<32x8xf32>
    %104 = arith.mulf %93, %103 : vector<32x8xf32>
    %105 = arith.addf %102, %104 : vector<32x8xf32>
    %106 = math.tanh %105 : vector<32x8xf32>
    %cst_26 = arith.constant 1.000000e+00 : f32
    %107 = vector.broadcast %cst_26 : f32 to vector<32x8xf32>
    %108 = arith.subf %107, %101 : vector<32x8xf32>
    %109 = arith.mulf %108, %106 : vector<32x8xf32>
    %110 = arith.mulf %101, %77 : vector<32x8xf32>
    %111 = arith.addf %109, %110 : vector<32x8xf32>
    %c2 = arith.constant 2 : index
    %c0_27 = arith.constant 0 : index
    %c0_28 = arith.constant 0 : index
    %112 = vector.load %arg8[%c2, %c0_27, %c0_28] : memref<8x32x8xf32, #tpu.memory_space<vmem>>, vector<1x32x8xf32>
    %113 = vector.shape_cast %112 : vector<1x32x8xf32> to vector<32x8xf32>
    %114 = vector.shape_cast %111 : vector<32x8xf32> to vector<1x32x8xf32>
    tpu.vector_store %arg8[%c2, %c0_27, %c0_28], %114 {strides = array<i32>} : memref<8x32x8xf32, #tpu.memory_space<vmem>>, vector<1x32x8xf32>,
    %115 = vector.extract_strided_slice %11 {offsets = [3, 0, 0], sizes = [1, 96, 8], strides = [1, 1, 1]} : vector<8x96x8xf32> to vector<1x96x8xf32>
    %116 = vector.shape_cast %115 : vector<1x96x8xf32> to vector<96x8xf32>
    %cst_29 = arith.constant dense<0.000000e+00> : vector<96x8xf32>
    %117 = tpu.matmul %0, %111, %cst_29 {dimension_numbers = #tpu.dot_dimension_numbers<[1], [0], [0], [1], [0, 0, 1, 1], [], []>} : vector<96x32xf32>, vector<32x8xf32>, vector<96x8xf32> -> vector<96x8xf32>
    %118 = vector.broadcast %1 : vector<96x1xf32> to vector<96x8xf32>
    %119 = arith.addf %117, %118 : vector<96x8xf32>
    %120 = vector.extract_strided_slice %116 {offsets = [0, 0], sizes = [32, 8], strides = [1, 1]} : vector<96x8xf32> to vector<32x8xf32>
    %121 = vector.extract_strided_slice %119 {offsets = [0, 0], sizes = [32, 8], strides = [1, 1]} : vector<96x8xf32> to vector<32x8xf32>
    %122 = arith.addf %120, %121 : vector<32x8xf32>
    %123 = arith.negf %122 : vector<32x8xf32>
    %124 = math.exp %123 : vector<32x8xf32>
    %cst_30 = arith.constant 1.000000e+00 : f32
    %125 = vector.broadcast %cst_30 : f32 to vector<32x8xf32>
    %126 = arith.addf %125, %124 : vector<32x8xf32>
    %127 = arith.divf %125, %126 : vector<32x8xf32>
    %128 = vector.extract_strided_slice %116 {offsets = [32, 0], sizes = [32, 8], strides = [1, 1]} : vector<96x8xf32> to vector<32x8xf32>
    %129 = vector.extract_strided_slice %119 {offsets = [32, 0], sizes = [32, 8], strides = [1, 1]} : vector<96x8xf32> to vector<32x8xf32>
    %130 = arith.addf %128, %129 : vector<32x8xf32>
    %131 = arith.negf %130 : vector<32x8xf32>
    %132 = math.exp %131 : vector<32x8xf32>
    %cst_31 = arith.constant 1.000000e+00 : f32
    %133 = vector.broadcast %cst_31 : f32 to vector<32x8xf32>
    %134 = arith.addf %133, %132 : vector<32x8xf32>
    %135 = arith.divf %133, %134 : vector<32x8xf32>
    %136 = vector.extract_strided_slice %116 {offsets = [64, 0], sizes = [32, 8], strides = [1, 1]} : vector<96x8xf32> to vector<32x8xf32>
    %137 = vector.extract_strided_slice %119 {offsets = [64, 0], sizes = [32, 8], strides = [1, 1]} : vector<96x8xf32> to vector<32x8xf32>
    %138 = arith.mulf %127, %137 : vector<32x8xf32>
    %139 = arith.addf %136, %138 : vector<32x8xf32>
    %140 = math.tanh %139 : vector<32x8xf32>
    %cst_32 = arith.constant 1.000000e+00 : f32
    %141 = vector.broadcast %cst_32 : f32 to vector<32x8xf32>
    %142 = arith.subf %141, %135 : vector<32x8xf32>
    %143 = arith.mulf %142, %140 : vector<32x8xf32>
    %144 = arith.mulf %135, %111 : vector<32x8xf32>
    %145 = arith.addf %143, %144 : vector<32x8xf32>
    %c3 = arith.constant 3 : index
    %c0_33 = arith.constant 0 : index
    %c0_34 = arith.constant 0 : index
    %146 = vector.load %arg8[%c3, %c0_33, %c0_34] : memref<8x32x8xf32, #tpu.memory_space<vmem>>, vector<1x32x8xf32>
    %147 = vector.shape_cast %146 : vector<1x32x8xf32> to vector<32x8xf32>
    %148 = vector.shape_cast %145 : vector<32x8xf32> to vector<1x32x8xf32>
    tpu.vector_store %arg8[%c3, %c0_33, %c0_34], %148 {strides = array<i32>} : memref<8x32x8xf32, #tpu.memory_space<vmem>>, vector<1x32x8xf32>,
    %149 = vector.extract_strided_slice %11 {offsets = [4, 0, 0], sizes = [1, 96, 8], strides = [1, 1, 1]} : vector<8x96x8xf32> to vector<1x96x8xf32>
    %150 = vector.shape_cast %149 : vector<1x96x8xf32> to vector<96x8xf32>
    %cst_35 = arith.constant dense<0.000000e+00> : vector<96x8xf32>
    %151 = tpu.matmul %0, %145, %cst_35 {dimension_numbers = #tpu.dot_dimension_numbers<[1], [0], [0], [1], [0, 0, 1, 1], [], []>} : vector<96x32xf32>, vector<32x8xf32>, vector<96x8xf32> -> vector<96x8xf32>
    %152 = vector.broadcast %1 : vector<96x1xf32> to vector<96x8xf32>
    %153 = arith.addf %151, %152 : vector<96x8xf32>
    %154 = vector.extract_strided_slice %150 {offsets = [0, 0], sizes = [32, 8], strides = [1, 1]} : vector<96x8xf32> to vector<32x8xf32>
    %155 = vector.extract_strided_slice %153 {offsets = [0, 0], sizes = [32, 8], strides = [1, 1]} : vector<96x8xf32> to vector<32x8xf32>
    %156 = arith.addf %154, %155 : vector<32x8xf32>
    %157 = arith.negf %156 : vector<32x8xf32>
    %158 = math.exp %157 : vector<32x8xf32>
    %cst_36 = arith.constant 1.000000e+00 : f32
    %159 = vector.broadcast %cst_36 : f32 to vector<32x8xf32>
    %160 = arith.addf %159, %158 : vector<32x8xf32>
    %161 = arith.divf %159, %160 : vector<32x8xf32>
    %162 = vector.extract_strided_slice %150 {offsets = [32, 0], sizes = [32, 8], strides = [1, 1]} : vector<96x8xf32> to vector<32x8xf32>
    %163 = vector.extract_strided_slice %153 {offsets = [32, 0], sizes = [32, 8], strides = [1, 1]} : vector<96x8xf32> to vector<32x8xf32>
    %164 = arith.addf %162, %163 : vector<32x8xf32>
    %165 = arith.negf %164 : vector<32x8xf32>
    %166 = math.exp %165 : vector<32x8xf32>
    %cst_37 = arith.constant 1.000000e+00 : f32
    %167 = vector.broadcast %cst_37 : f32 to vector<32x8xf32>
    %168 = arith.addf %167, %166 : vector<32x8xf32>
    %169 = arith.divf %167, %168 : vector<32x8xf32>
    %170 = vector.extract_strided_slice %150 {offsets = [64, 0], sizes = [32, 8], strides = [1, 1]} : vector<96x8xf32> to vector<32x8xf32>
    %171 = vector.extract_strided_slice %153 {offsets = [64, 0], sizes = [32, 8], strides = [1, 1]} : vector<96x8xf32> to vector<32x8xf32>
    %172 = arith.mulf %161, %171 : vector<32x8xf32>
    %173 = arith.addf %170, %172 : vector<32x8xf32>
    %174 = math.tanh %173 : vector<32x8xf32>
    %cst_38 = arith.constant 1.000000e+00 : f32
    %175 = vector.broadcast %cst_38 : f32 to vector<32x8xf32>
    %176 = arith.subf %175, %169 : vector<32x8xf32>
    %177 = arith.mulf %176, %174 : vector<32x8xf32>
    %178 = arith.mulf %169, %145 : vector<32x8xf32>
    %179 = arith.addf %177, %178 : vector<32x8xf32>
    %c4 = arith.constant 4 : index
    %c0_39 = arith.constant 0 : index
    %c0_40 = arith.constant 0 : index
    %180 = vector.load %arg8[%c4, %c0_39, %c0_40] : memref<8x32x8xf32, #tpu.memory_space<vmem>>, vector<1x32x8xf32>
    %181 = vector.shape_cast %180 : vector<1x32x8xf32> to vector<32x8xf32>
    %182 = vector.shape_cast %179 : vector<32x8xf32> to vector<1x32x8xf32>
    tpu.vector_store %arg8[%c4, %c0_39, %c0_40], %182 {strides = array<i32>} : memref<8x32x8xf32, #tpu.memory_space<vmem>>, vector<1x32x8xf32>,
    %183 = vector.extract_strided_slice %11 {offsets = [5, 0, 0], sizes = [1, 96, 8], strides = [1, 1, 1]} : vector<8x96x8xf32> to vector<1x96x8xf32>
    %184 = vector.shape_cast %183 : vector<1x96x8xf32> to vector<96x8xf32>
    %cst_41 = arith.constant dense<0.000000e+00> : vector<96x8xf32>
    %185 = tpu.matmul %0, %179, %cst_41 {dimension_numbers = #tpu.dot_dimension_numbers<[1], [0], [0], [1], [0, 0, 1, 1], [], []>} : vector<96x32xf32>, vector<32x8xf32>, vector<96x8xf32> -> vector<96x8xf32>
    %186 = vector.broadcast %1 : vector<96x1xf32> to vector<96x8xf32>
    %187 = arith.addf %185, %186 : vector<96x8xf32>
    %188 = vector.extract_strided_slice %184 {offsets = [0, 0], sizes = [32, 8], strides = [1, 1]} : vector<96x8xf32> to vector<32x8xf32>
    %189 = vector.extract_strided_slice %187 {offsets = [0, 0], sizes = [32, 8], strides = [1, 1]} : vector<96x8xf32> to vector<32x8xf32>
    %190 = arith.addf %188, %189 : vector<32x8xf32>
    %191 = arith.negf %190 : vector<32x8xf32>
    %192 = math.exp %191 : vector<32x8xf32>
    %cst_42 = arith.constant 1.000000e+00 : f32
    %193 = vector.broadcast %cst_42 : f32 to vector<32x8xf32>
    %194 = arith.addf %193, %192 : vector<32x8xf32>
    %195 = arith.divf %193, %194 : vector<32x8xf32>
    %196 = vector.extract_strided_slice %184 {offsets = [32, 0], sizes = [32, 8], strides = [1, 1]} : vector<96x8xf32> to vector<32x8xf32>
    %197 = vector.extract_strided_slice %187 {offsets = [32, 0], sizes = [32, 8], strides = [1, 1]} : vector<96x8xf32> to vector<32x8xf32>
    %198 = arith.addf %196, %197 : vector<32x8xf32>
    %199 = arith.negf %198 : vector<32x8xf32>
    %200 = math.exp %199 : vector<32x8xf32>
    %cst_43 = arith.constant 1.000000e+00 : f32
    %201 = vector.broadcast %cst_43 : f32 to vector<32x8xf32>
    %202 = arith.addf %201, %200 : vector<32x8xf32>
    %203 = arith.divf %201, %202 : vector<32x8xf32>
    %204 = vector.extract_strided_slice %184 {offsets = [64, 0], sizes = [32, 8], strides = [1, 1]} : vector<96x8xf32> to vector<32x8xf32>
    %205 = vector.extract_strided_slice %187 {offsets = [64, 0], sizes = [32, 8], strides = [1, 1]} : vector<96x8xf32> to vector<32x8xf32>
    %206 = arith.mulf %195, %205 : vector<32x8xf32>
    %207 = arith.addf %204, %206 : vector<32x8xf32>
    %208 = math.tanh %207 : vector<32x8xf32>
    %cst_44 = arith.constant 1.000000e+00 : f32
    %209 = vector.broadcast %cst_44 : f32 to vector<32x8xf32>
    %210 = arith.subf %209, %203 : vector<32x8xf32>
    %211 = arith.mulf %210, %208 : vector<32x8xf32>
    %212 = arith.mulf %203, %179 : vector<32x8xf32>
    %213 = arith.addf %211, %212 : vector<32x8xf32>
    %c5 = arith.constant 5 : index
    %c0_45 = arith.constant 0 : index
    %c0_46 = arith.constant 0 : index
    %214 = vector.load %arg8[%c5, %c0_45, %c0_46] : memref<8x32x8xf32, #tpu.memory_space<vmem>>, vector<1x32x8xf32>
    %215 = vector.shape_cast %214 : vector<1x32x8xf32> to vector<32x8xf32>
    %216 = vector.shape_cast %213 : vector<32x8xf32> to vector<1x32x8xf32>
    tpu.vector_store %arg8[%c5, %c0_45, %c0_46], %216 {strides = array<i32>} : memref<8x32x8xf32, #tpu.memory_space<vmem>>, vector<1x32x8xf32>,
    %217 = vector.extract_strided_slice %11 {offsets = [6, 0, 0], sizes = [1, 96, 8], strides = [1, 1, 1]} : vector<8x96x8xf32> to vector<1x96x8xf32>
    %218 = vector.shape_cast %217 : vector<1x96x8xf32> to vector<96x8xf32>
    %cst_47 = arith.constant dense<0.000000e+00> : vector<96x8xf32>
    %219 = tpu.matmul %0, %213, %cst_47 {dimension_numbers = #tpu.dot_dimension_numbers<[1], [0], [0], [1], [0, 0, 1, 1], [], []>} : vector<96x32xf32>, vector<32x8xf32>, vector<96x8xf32> -> vector<96x8xf32>
    %220 = vector.broadcast %1 : vector<96x1xf32> to vector<96x8xf32>
    %221 = arith.addf %219, %220 : vector<96x8xf32>
    %222 = vector.extract_strided_slice %218 {offsets = [0, 0], sizes = [32, 8], strides = [1, 1]} : vector<96x8xf32> to vector<32x8xf32>
    %223 = vector.extract_strided_slice %221 {offsets = [0, 0], sizes = [32, 8], strides = [1, 1]} : vector<96x8xf32> to vector<32x8xf32>
    %224 = arith.addf %222, %223 : vector<32x8xf32>
    %225 = arith.negf %224 : vector<32x8xf32>
    %226 = math.exp %225 : vector<32x8xf32>
    %cst_48 = arith.constant 1.000000e+00 : f32
    %227 = vector.broadcast %cst_48 : f32 to vector<32x8xf32>
    %228 = arith.addf %227, %226 : vector<32x8xf32>
    %229 = arith.divf %227, %228 : vector<32x8xf32>
    %230 = vector.extract_strided_slice %218 {offsets = [32, 0], sizes = [32, 8], strides = [1, 1]} : vector<96x8xf32> to vector<32x8xf32>
    %231 = vector.extract_strided_slice %221 {offsets = [32, 0], sizes = [32, 8], strides = [1, 1]} : vector<96x8xf32> to vector<32x8xf32>
    %232 = arith.addf %230, %231 : vector<32x8xf32>
    %233 = arith.negf %232 : vector<32x8xf32>
    %234 = math.exp %233 : vector<32x8xf32>
    %cst_49 = arith.constant 1.000000e+00 : f32
    %235 = vector.broadcast %cst_49 : f32 to vector<32x8xf32>
    %236 = arith.addf %235, %234 : vector<32x8xf32>
    %237 = arith.divf %235, %236 : vector<32x8xf32>
    %238 = vector.extract_strided_slice %218 {offsets = [64, 0], sizes = [32, 8], strides = [1, 1]} : vector<96x8xf32> to vector<32x8xf32>
    %239 = vector.extract_strided_slice %221 {offsets = [64, 0], sizes = [32, 8], strides = [1, 1]} : vector<96x8xf32> to vector<32x8xf32>
    %240 = arith.mulf %229, %239 : vector<32x8xf32>
    %241 = arith.addf %238, %240 : vector<32x8xf32>
    %242 = math.tanh %241 : vector<32x8xf32>
    %cst_50 = arith.constant 1.000000e+00 : f32
    %243 = vector.broadcast %cst_50 : f32 to vector<32x8xf32>
    %244 = arith.subf %243, %237 : vector<32x8xf32>
    %245 = arith.mulf %244, %242 : vector<32x8xf32>
    %246 = arith.mulf %237, %213 : vector<32x8xf32>
    %247 = arith.addf %245, %246 : vector<32x8xf32>
    %c6 = arith.constant 6 : index
    %c0_51 = arith.constant 0 : index
    %c0_52 = arith.constant 0 : index
    %248 = vector.load %arg8[%c6, %c0_51, %c0_52] : memref<8x32x8xf32, #tpu.memory_space<vmem>>, vector<1x32x8xf32>
    %249 = vector.shape_cast %248 : vector<1x32x8xf32> to vector<32x8xf32>
    %250 = vector.shape_cast %247 : vector<32x8xf32> to vector<1x32x8xf32>
    tpu.vector_store %arg8[%c6, %c0_51, %c0_52], %250 {strides = array<i32>} : memref<8x32x8xf32, #tpu.memory_space<vmem>>, vector<1x32x8xf32>,
    %251 = vector.extract_strided_slice %11 {offsets = [7, 0, 0], sizes = [1, 96, 8], strides = [1, 1, 1]} : vector<8x96x8xf32> to vector<1x96x8xf32>
    %252 = vector.shape_cast %251 : vector<1x96x8xf32> to vector<96x8xf32>
    %cst_53 = arith.constant dense<0.000000e+00> : vector<96x8xf32>
    %253 = tpu.matmul %0, %247, %cst_53 {dimension_numbers = #tpu.dot_dimension_numbers<[1], [0], [0], [1], [0, 0, 1, 1], [], []>} : vector<96x32xf32>, vector<32x8xf32>, vector<96x8xf32> -> vector<96x8xf32>
    %254 = vector.broadcast %1 : vector<96x1xf32> to vector<96x8xf32>
    %255 = arith.addf %253, %254 : vector<96x8xf32>
    %256 = vector.extract_strided_slice %252 {offsets = [0, 0], sizes = [32, 8], strides = [1, 1]} : vector<96x8xf32> to vector<32x8xf32>
    %257 = vector.extract_strided_slice %255 {offsets = [0, 0], sizes = [32, 8], strides = [1, 1]} : vector<96x8xf32> to vector<32x8xf32>
    %258 = arith.addf %256, %257 : vector<32x8xf32>
    %259 = arith.negf %258 : vector<32x8xf32>
    %260 = math.exp %259 : vector<32x8xf32>
    %cst_54 = arith.constant 1.000000e+00 : f32
    %261 = vector.broadcast %cst_54 : f32 to vector<32x8xf32>
    %262 = arith.addf %261, %260 : vector<32x8xf32>
    %263 = arith.divf %261, %262 : vector<32x8xf32>
    %264 = vector.extract_strided_slice %252 {offsets = [32, 0], sizes = [32, 8], strides = [1, 1]} : vector<96x8xf32> to vector<32x8xf32>
    %265 = vector.extract_strided_slice %255 {offsets = [32, 0], sizes = [32, 8], strides = [1, 1]} : vector<96x8xf32> to vector<32x8xf32>
    %266 = arith.addf %264, %265 : vector<32x8xf32>
    %267 = arith.negf %266 : vector<32x8xf32>
    %268 = math.exp %267 : vector<32x8xf32>
    %cst_55 = arith.constant 1.000000e+00 : f32
    %269 = vector.broadcast %cst_55 : f32 to vector<32x8xf32>
    %270 = arith.addf %269, %268 : vector<32x8xf32>
    %271 = arith.divf %269, %270 : vector<32x8xf32>
    %272 = vector.extract_strided_slice %252 {offsets = [64, 0], sizes = [32, 8], strides = [1, 1]} : vector<96x8xf32> to vector<32x8xf32>
    %273 = vector.extract_strided_slice %255 {offsets = [64, 0], sizes = [32, 8], strides = [1, 1]} : vector<96x8xf32> to vector<32x8xf32>
    %274 = arith.mulf %263, %273 : vector<32x8xf32>
    %275 = arith.addf %272, %274 : vector<32x8xf32>
    %276 = math.tanh %275 : vector<32x8xf32>
    %cst_56 = arith.constant 1.000000e+00 : f32
    %277 = vector.broadcast %cst_56 : f32 to vector<32x8xf32>
    %278 = arith.subf %277, %271 : vector<32x8xf32>
    %279 = arith.mulf %278, %276 : vector<32x8xf32>
    %280 = arith.mulf %271, %247 : vector<32x8xf32>
    %281 = arith.addf %279, %280 : vector<32x8xf32>
    %c7 = arith.constant 7 : index
    %c0_57 = arith.constant 0 : index
    %c0_58 = arith.constant 0 : index
    %282 = vector.load %arg8[%c7, %c0_57, %c0_58] : memref<8x32x8xf32, #tpu.memory_space<vmem>>, vector<1x32x8xf32>
    %283 = vector.shape_cast %282 : vector<1x32x8xf32> to vector<32x8xf32>
    %284 = vector.shape_cast %281 : vector<32x8xf32> to vector<1x32x8xf32>
    tpu.vector_store %arg8[%c7, %c0_57, %c0_58], %284 {strides = array<i32>} : memref<8x32x8xf32, #tpu.memory_space<vmem>>, vector<1x32x8xf32>,
    %c0_59 = arith.constant 0 : index
    %c0_60 = arith.constant 0 : index
    %c0_61 = arith.constant 0 : index
    %285 = vector.load %arg8[%c0_59, %c0_60, %c0_61] : memref<8x32x8xf32, #tpu.memory_space<vmem>>, vector<8x32x8xf32>
    %c0_62 = arith.constant 0 : index
    %c0_63 = arith.constant 0 : index
    %286 = vector.load %arg6[%c0_62, %c0_63] : memref<32x1xf32, #tpu.memory_space<vmem>>, vector<32x1xf32>
    %287 = vector.shape_cast %286 : vector<32x1xf32> to vector<1x32x1xf32>
    %288 = vector.broadcast %287 : vector<1x32x1xf32> to vector<8x32x8xf32>
    %289 = arith.mulf %285, %288 : vector<8x32x8xf32>
    %cst_64 = arith.constant dense<0.000000e+00> : vector<8x8xf32>
    %290 = vector.multi_reduction <add>, %289, %cst_64 [1] : vector<8x32x8xf32> to vector<8x8xf32>
    %c0_65 = arith.constant 0 : index
    %c0_66 = arith.constant 0 : index
    %291 = memref.load %arg0[%c0_65, %c0_66] : memref<1x1xf32, #tpu.memory_space<smem>>
    %292 = vector.broadcast %291 : f32 to vector<8x8xf32>
    %293 = arith.addf %290, %292 : vector<8x8xf32>
    %294 = arith.negf %293 : vector<8x8xf32>
    %295 = math.exp %294 : vector<8x8xf32>
    %cst_67 = arith.constant 1.000000e+00 : f32
    %296 = vector.broadcast %cst_67 : f32 to vector<8x8xf32>
    %297 = arith.addf %296, %295 : vector<8x8xf32>
    %298 = arith.divf %296, %297 : vector<8x8xf32>
    %c0_68 = arith.constant 0 : index
    %c0_69 = arith.constant 0 : index
    %299 = vector.load %arg7[%c0_68, %c0_69] : memref<8x8xf32, #tpu.memory_space<vmem>>, vector<8x8xf32>
    tpu.vector_store %arg7[%c0_68, %c0_69], %298 {strides = array<i32>} : memref<8x8xf32, #tpu.memory_space<vmem>>, vector<8x8xf32>,
    return
  }
}

</mosaic_0001>

<llo_original>
// kernel: tpu_custom_call.1
$region0: #{tpu_custom_call.1}
  #allocation0 [shape = 'u32[]', space=smem, size = 0x4, offset = 0x4, fixed_abs, tag = 'smem constant byte address 0x4 - core index']
  #allocation1 [shape = 'u32[144,128]{1,0:T(1,128)}', space=vmem, size = 0x12000, scoped, tag = 'internal scratch']
  #allocation2 [shape = 'f32[8,32,8]{2,1,0:T(8,128)}', space=vmem, size = 0x20000, scoped, tag = 'scratch operand']
  #allocation3 [shape = 'f32[1,1]{1,0:T(1,128)S(6)}', space=smem, size = 0x200, scoped, tag = 'scoped memory for tpu_custom_call.1']
  %s0 = inlined_call_operand.<no memory space> [shape: f32[1,1], index: 0, kind: input, shape index: {}]
  %s1 = inlined_call_operand.vmem [shape: f32[8,1,8], index: 1, kind: input, shape index: {}]
  %s2 = inlined_call_operand.vmem [shape: f32[96,1], index: 2, kind: input, shape index: {}]
  %s3 = inlined_call_operand.vmem [shape: f32[96,1], index: 3, kind: input, shape index: {}]
  %s4 = inlined_call_operand.vmem [shape: f32[96,32], index: 4, kind: input, shape index: {}]
  %s5 = inlined_call_operand.vmem [shape: f32[96,1], index: 5, kind: input, shape index: {}]
  %s6 = inlined_call_operand.vmem [shape: f32[32,1], index: 6, kind: input, shape index: {}]
  %s7 = inlined_call_operand.hbm [shape: f32[8,8], index: 7, kind: output, shape index: {}]
  %s8 = sld [smem:[#allocation0]]
  $region38: #{tpu_custom_call.1} parent=0
    _
  %s10 = ssub.s32 1, %s8
  %s11 = scalar_select 0, %s10, %s8
  %12 = sst [smem:[#allocation3]] %s0
  $region1: #{tpu_custom_call.1} parent=0
    #allocation4 [shape = 'u8[4096]{0}', space=vmem, size = 0x1000, scoped, tag = 'output window, operand 0, single buffered']
    #allocation5 [shape = 's32[1]{0}', space=sflag, size = 0x4, scoped, tag = 'scoped memory for tpu_custom_call.1']
    %13 = vsyncpa [#allocation5], 0
    // Predicated region
    $region2: #{tpu_custom_call.1} parent=1 // pred_check
      _
    $region3: #{tpu_custom_call.1} parent=1 // pred_check_branch
      %15 = sbr.rel (0) target = $region5
    $region4: #{tpu_custom_call.1} parent=1 // pred_region
      _
    $region5: #{tpu_custom_call.1} parent=1 // pred_fallthru
      _
    // Predicated region
    $region6: #{tpu_custom_call.1} parent=1 // pred_check
      _
    $region7: #{tpu_custom_call.1} parent=1 // pred_check_branch
      %17 = sbr.rel (0) target = $region9
    $region8: #{tpu_custom_call.1} parent=1 // pred_region
      _
    $region9: #{tpu_custom_call.1} parent=1 // pred_fallthru
      _
    // Predicated region
    $region10: #{tpu_custom_call.1} parent=1 // pred_check
      _
    $region11: #{tpu_custom_call.1} parent=1 // pred_check_branch
      %19 = sbr.rel (0) target = $region13
    $region12: #{tpu_custom_call.1} parent=1 // pred_region
      _
    $region13: #{tpu_custom_call.1} parent=1 // pred_fallthru
      _
    // Predicated region
    $region14: #{tpu_custom_call.1} parent=1 // pred_check
      _
    $region15: #{tpu_custom_call.1} parent=1 // pred_check_branch
      %21 = sbr.rel (0) target = $region17
    $region16: #{tpu_custom_call.1} parent=1 // pred_region
      _
    $region17: #{tpu_custom_call.1} parent=1 // pred_fallthru
      _
    // Predicated region
    $region18: #{tpu_custom_call.1} parent=1 // pred_check
      _
    $region19: #{tpu_custom_call.1} parent=1 // pred_check_branch
      %23 = sbr.rel (0) target = $region21
    $region20: #{tpu_custom_call.1} parent=1 // pred_region
      _
    $region21: #{tpu_custom_call.1} parent=1 // pred_fallthru
      _
    // Predicated region
    $region22: #{tpu_custom_call.1} parent=1 // pred_check
      _
    $region23: #{tpu_custom_call.1} parent=1 // pred_check_branch
      %25 = sbr.rel (0) target = $region25
    $region24: #{tpu_custom_call.1} parent=1 // pred_region
      _
    $region25: #{tpu_custom_call.1} parent=1 // pred_fallthru
      _
    // Predicated region
    $region26: #{tpu_custom_call.1} parent=1 // pred_check
      _
    $region27: #{tpu_custom_call.1} parent=1 // pred_check_branch
      %27 = sbr.rel (0) target = $region29
    $region28: #{tpu_custom_call.1} parent=1 // pred_region
      _
    $region29: #{tpu_custom_call.1} parent=1 // pred_fallthru
      _
    %v28 = vld [vmem:[%s4] sm:$0xff]
    %v29 = vld [vmem:[%s4 + $0x8] sm:$0xff]
    %v30 = vld [vmem:[%s4 + $0x10] sm:$0xff]
    %v31 = vld [vmem:[%s4 + $0x18] sm:$0xff]
    %v32 = vld [vmem:[%s4 + $0x20] sm:$0xff]
    %v33 = vld [vmem:[%s4 + $0x28] sm:$0xff]
    %v34 = vld [vmem:[%s4 + $0x30] sm:$0xff]
    %v35 = vld [vmem:[%s4 + $0x38] sm:$0xff]
    %v36 = vld [vmem:[%s4 + $0x40] sm:$0xff]
    %v37 = vld [vmem:[%s4 + $0x48] sm:$0xff]
    %v38 = vld [vmem:[%s4 + $0x50] sm:$0xff]
    %v39 = vld [vmem:[%s4 + $0x58] sm:$0xff]
    %v40 = vld [vmem:[%s5] sm:$0xff]
    %v41 = vld [vmem:[%s5 + $0x8] sm:$0xff]
    %v42 = vld [vmem:[%s5 + $0x10] sm:$0xff]
    %v43 = vld [vmem:[%s5 + $0x18] sm:$0xff]
    %v44 = vld [vmem:[%s5 + $0x20] sm:$0xff]
    %v45 = vld [vmem:[%s5 + $0x28] sm:$0xff]
    %v46 = vld [vmem:[%s5 + $0x30] sm:$0xff]
    %v47 = vld [vmem:[%s5 + $0x38] sm:$0xff]
    %v48 = vld [vmem:[%s5 + $0x40] sm:$0xff]
    %v49 = vld [vmem:[%s5 + $0x48] sm:$0xff]
    %v50 = vld [vmem:[%s5 + $0x50] sm:$0xff]
    %v51 = vld [vmem:[%s5 + $0x58] sm:$0xff]
    %v52 = vld [vmem:[%s1] sm:$0x1]
    %v53 = vld [vmem:[%s1 + $0x1] sm:$0x1]
    %v54 = vld [vmem:[%s1 + $0x2] sm:$0x1]
    %v55 = vld [vmem:[%s1 + $0x3] sm:$0x1]
    %v56 = vld [vmem:[%s1 + $0x4] sm:$0x1]
    %v57 = vld [vmem:[%s1 + $0x5] sm:$0x1]
    %v58 = vld [vmem:[%s1 + $0x6] sm:$0x1]
    %v59 = vld [vmem:[%s1 + $0x7] sm:$0x1]
    %v60 = vld [vmem:[%s2] sm:$0xff]
    %v61 = vld [vmem:[%s2 + $0x8] sm:$0xff]
    %v62 = vld [vmem:[%s2 + $0x10] sm:$0xff]
    %v63 = vld [vmem:[%s2 + $0x18] sm:$0xff]
    %v64 = vld [vmem:[%s2 + $0x20] sm:$0xff]
    %v65 = vld [vmem:[%s2 + $0x28] sm:$0xff]
    %v66 = vld [vmem:[%s2 + $0x30] sm:$0xff]
    %v67 = vld [vmem:[%s2 + $0x38] sm:$0xff]
    %v68 = vld [vmem:[%s2 + $0x40] sm:$0xff]
    %v69 = vld [vmem:[%s2 + $0x48] sm:$0xff]
    %v70 = vld [vmem:[%s2 + $0x50] sm:$0xff]
    %v71 = vld [vmem:[%s2 + $0x58] sm:$0xff]
    %v80 = vlaneseq
    %v81 = vshrl.u32 %v80, 7
    %v82 = vsub.s32 0, %v81
    %v83 = vrot.slane %v52, %v82
    %v84 = vlaneseq
    %v85 = vshrl.u32 %v84, 7
    %v86 = vsub.s32 0, %v85
    %v87 = vrot.slane %v53, %v86
    %v88 = vlaneseq
    %v89 = vshrl.u32 %v88, 7
    %v90 = vsub.s32 0, %v89
    %v91 = vrot.slane %v54, %v90
    %v92 = vlaneseq
    %v93 = vshrl.u32 %v92, 7
    %v94 = vsub.s32 0, %v93
    %v95 = vrot.slane %v55, %v94
    %v96 = vlaneseq
    %v97 = vshrl.u32 %v96, 7
    %v98 = vsub.s32 0, %v97
    %v99 = vrot.slane %v56, %v98
    %v100 = vlaneseq
    %v101 = vshrl.u32 %v100, 7
    %v102 = vsub.s32 0, %v101
    %v103 = vrot.slane %v57, %v102
    %v104 = vlaneseq
    %v105 = vshrl.u32 %v104, 7
    %v106 = vsub.s32 0, %v105
    %v107 = vrot.slane %v58, %v106
    %v108 = vlaneseq
    %v109 = vshrl.u32 %v108, 7
    %v110 = vsub.s32 0, %v109
    %v111 = vrot.slane %v59, %v110
    %121 = vset.pattern.permute.xlu0 0
    %122 = vperm.xlu0 %121, %v60
    %v123 = vpop.permute.xlu0 %122
    %126 = vset.pattern.permute.xlu0 0
    %127 = vperm.xlu0 %126, %v61
    %v128 = vpop.permute.xlu0 %127
    %131 = vset.pattern.permute.xlu0 0
    %132 = vperm.xlu0 %131, %v62
    %v133 = vpop.permute.xlu0 %132
    %136 = vset.pattern.permute.xlu0 0
    %137 = vperm.xlu0 %136, %v63
    %v138 = vpop.permute.xlu0 %137
    %141 = vset.pattern.permute.xlu0 0
    %142 = vperm.xlu0 %141, %v64
    %v143 = vpop.permute.xlu0 %142
    %146 = vset.pattern.permute.xlu0 0
    %147 = vperm.xlu0 %146, %v65
    %v148 = vpop.permute.xlu0 %147
    %151 = vset.pattern.permute.xlu0 0
    %152 = vperm.xlu0 %151, %v66
    %v153 = vpop.permute.xlu0 %152
    %156 = vset.pattern.permute.xlu0 0
    %157 = vperm.xlu0 %156, %v67
    %v158 = vpop.permute.xlu0 %157
    %161 = vset.pattern.permute.xlu0 0
    %162 = vperm.xlu0 %161, %v68
    %v163 = vpop.permute.xlu0 %162
    %166 = vset.pattern.permute.xlu0 0
    %167 = vperm.xlu0 %166, %v69
    %v168 = vpop.permute.xlu0 %167
    %171 = vset.pattern.permute.xlu0 0
    %172 = vperm.xlu0 %171, %v70
    %v173 = vpop.permute.xlu0 %172
    %176 = vset.pattern.permute.xlu0 0
    %177 = vperm.xlu0 %176, %v71
    %v178 = vpop.permute.xlu0 %177
    %v180 = vmul.f32 %v83, %v123
    %v181 = vmul.f32 %v83, %v128
    %v182 = vmul.f32 %v83, %v133
    %v183 = vmul.f32 %v83, %v138
    %v184 = vmul.f32 %v83, %v143
    %v185 = vmul.f32 %v83, %v148
    %v186 = vmul.f32 %v83, %v153
    %v187 = vmul.f32 %v83, %v158
    %v188 = vmul.f32 %v83, %v163
    %v189 = vmul.f32 %v83, %v168
    %v190 = vmul.f32 %v83, %v173
    %v191 = vmul.f32 %v83, %v178
    %v192 = vmul.f32 %v87, %v123
    %v193 = vmul.f32 %v87, %v128
    %v194 = vmul.f32 %v87, %v133
    %v195 = vmul.f32 %v87, %v138
    %v196 = vmul.f32 %v87, %v143
    %v197 = vmul.f32 %v87, %v148
    %v198 = vmul.f32 %v87, %v153
    %v199 = vmul.f32 %v87, %v158
    %v200 = vmul.f32 %v87, %v163
    %v201 = vmul.f32 %v87, %v168
    %v202 = vmul.f32 %v87, %v173
    %v203 = vmul.f32 %v87, %v178
    %v204 = vmul.f32 %v91, %v123
    %v205 = vmul.f32 %v91, %v128
    %v206 = vmul.f32 %v91, %v133
    %v207 = vmul.f32 %v91, %v138
    %v208 = vmul.f32 %v91, %v143
    %v209 = vmul.f32 %v91, %v148
    %v210 = vmul.f32 %v91, %v153
    %v211 = vmul.f32 %v91, %v158
    %v212 = vmul.f32 %v91, %v163
    %v213 = vmul.f32 %v91, %v168
    %v214 = vmul.f32 %v91, %v173
    %v215 = vmul.f32 %v91, %v178
    %v216 = vmul.f32 %v95, %v123
    %v217 = vmul.f32 %v95, %v128
    %v218 = vmul.f32 %v95, %v133
    %v219 = vmul.f32 %v95, %v138
    %v220 = vmul.f32 %v95, %v143
    %v221 = vmul.f32 %v95, %v148
    %v222 = vmul.f32 %v95, %v153
    %v223 = vmul.f32 %v95, %v158
    %v224 = vmul.f32 %v95, %v163
    %v225 = vmul.f32 %v95, %v168
    %v226 = vmul.f32 %v95, %v173
    %v227 = vmul.f32 %v95, %v178
    %v228 = vmul.f32 %v99, %v123
    %v229 = vmul.f32 %v99, %v128
    %v230 = vmul.f32 %v99, %v133
    %v231 = vmul.f32 %v99, %v138
    %v232 = vmul.f32 %v99, %v143
    %v233 = vmul.f32 %v99, %v148
    %v234 = vmul.f32 %v99, %v153
    %v235 = vmul.f32 %v99, %v158
    %v236 = vmul.f32 %v99, %v163
    %v237 = vmul.f32 %v99, %v168
    %v238 = vmul.f32 %v99, %v173
    %v239 = vmul.f32 %v99, %v178
    %v240 = vmul.f32 %v103, %v123
    %v241 = vmul.f32 %v103, %v128
    %v242 = vmul.f32 %v103, %v133
    %v243 = vmul.f32 %v103, %v138
    %v244 = vmul.f32 %v103, %v143
    %v245 = vmul.f32 %v103, %v148
    %v246 = vmul.f32 %v103, %v153
    %v247 = vmul.f32 %v103, %v158
    %v248 = vmul.f32 %v103, %v163
    %v249 = vmul.f32 %v103, %v168
    %v250 = vmul.f32 %v103, %v173
    %v251 = vmul.f32 %v103, %v178
    %v252 = vmul.f32 %v107, %v123
    %v253 = vmul.f32 %v107, %v128
    %v254 = vmul.f32 %v107, %v133
    %v255 = vmul.f32 %v107, %v138
    %v256 = vmul.f32 %v107, %v143
    %v257 = vmul.f32 %v107, %v148
    %v258 = vmul.f32 %v107, %v153
    %v259 = vmul.f32 %v107, %v158
    %v260 = vmul.f32 %v107, %v163
    %v261 = vmul.f32 %v107, %v168
    %v262 = vmul.f32 %v107, %v173
    %v263 = vmul.f32 %v107, %v178
    %v264 = vmul.f32 %v111, %v123
    %v265 = vmul.f32 %v111, %v128
    %v266 = vmul.f32 %v111, %v133
    %v267 = vmul.f32 %v111, %v138
    %v268 = vmul.f32 %v111, %v143
    %v269 = vmul.f32 %v111, %v148
    %v270 = vmul.f32 %v111, %v153
    %v271 = vmul.f32 %v111, %v158
    %v272 = vmul.f32 %v111, %v163
    %v273 = vmul.f32 %v111, %v168
    %v274 = vmul.f32 %v111, %v173
    %v275 = vmul.f32 %v111, %v178
    %v276 = vld [vmem:[%s3] sm:$0xff]
    %v277 = vld [vmem:[%s3 + $0x8] sm:$0xff]
    %v278 = vld [vmem:[%s3 + $0x10] sm:$0xff]
    %v279 = vld [vmem:[%s3 + $0x18] sm:$0xff]
    %v280 = vld [vmem:[%s3 + $0x20] sm:$0xff]
    %v281 = vld [vmem:[%s3 + $0x28] sm:$0xff]
    %v282 = vld [vmem:[%s3 + $0x30] sm:$0xff]
    %v283 = vld [vmem:[%s3 + $0x38] sm:$0xff]
    %v284 = vld [vmem:[%s3 + $0x40] sm:$0xff]
    %v285 = vld [vmem:[%s3 + $0x48] sm:$0xff]
    %v286 = vld [vmem:[%s3 + $0x50] sm:$0xff]
    %v287 = vld [vmem:[%s3 + $0x58] sm:$0xff]
    %289 = vset.pattern.permute.xlu0 0
    %290 = vperm.xlu0 %289, %v276
    %v291 = vpop.permute.xlu0 %290
    %294 = vset.pattern.permute.xlu0 0
    %295 = vperm.xlu0 %294, %v277
    %v296 = vpop.permute.xlu0 %295
    %299 = vset.pattern.permute.xlu0 0
    %300 = vperm.xlu0 %299, %v278
    %v301 = vpop.permute.xlu0 %300
    %304 = vset.pattern.permute.xlu0 0
    %305 = vperm.xlu0 %304, %v279
    %v306 = vpop.permute.xlu0 %305
    %309 = vset.pattern.permute.xlu0 0
    %310 = vperm.xlu0 %309, %v280
    %v311 = vpop.permute.xlu0 %310
    %314 = vset.pattern.permute.xlu0 0
    %315 = vperm.xlu0 %314, %v281
    %v316 = vpop.permute.xlu0 %315
    %319 = vset.pattern.permute.xlu0 0
    %320 = vperm.xlu0 %319, %v282
    %v321 = vpop.permute.xlu0 %320
    %324 = vset.pattern.permute.xlu0 0
    %325 = vperm.xlu0 %324, %v283
    %v326 = vpop.permute.xlu0 %325
    %329 = vset.pattern.permute.xlu0 0
    %330 = vperm.xlu0 %329, %v284
    %v331 = vpop.permute.xlu0 %330
    %334 = vset.pattern.permute.xlu0 0
    %335 = vperm.xlu0 %334, %v285
    %v336 = vpop.permute.xlu0 %335
    %339 = vset.pattern.permute.xlu0 0
    %340 = vperm.xlu0 %339, %v286
    %v341 = vpop.permute.xlu0 %340
    %344 = vset.pattern.permute.xlu0 0
    %345 = vperm.xlu0 %344, %v287
    %v346 = vpop.permute.xlu0 %345
    %v348 = vadd.f32 %v180, %v291
    %v349 = vadd.f32 %v181, %v296
    %v350 = vadd.f32 %v182, %v301
    %v351 = vadd.f32 %v183, %v306
    %v352 = vadd.f32 %v184, %v311
    %v353 = vadd.f32 %v185, %v316
    %v354 = vadd.f32 %v186, %v321
    %v355 = vadd.f32 %v187, %v326
    %v356 = vadd.f32 %v188, %v331
    %v357 = vadd.f32 %v189, %v336
    %v358 = vadd.f32 %v190, %v341
    %v359 = vadd.f32 %v191, %v346
    %v360 = vadd.f32 %v192, %v291
    %v361 = vadd.f32 %v193, %v296
    %v362 = vadd.f32 %v194, %v301
    %v363 = vadd.f32 %v195, %v306
    %v364 = vadd.f32 %v196, %v311
    %v365 = vadd.f32 %v197, %v316
    %v366 = vadd.f32 %v198, %v321
    %v367 = vadd.f32 %v199, %v326
    %v368 = vadd.f32 %v200, %v331
    %v369 = vadd.f32 %v201, %v336
    %v370 = vadd.f32 %v202, %v341
    %v371 = vadd.f32 %v203, %v346
    %v372 = vadd.f32 %v204, %v291
    %v373 = vadd.f32 %v205, %v296
    %v374 = vadd.f32 %v206, %v301
    %v375 = vadd.f32 %v207, %v306
    %v376 = vadd.f32 %v208, %v311
    %v377 = vadd.f32 %v209, %v316
    %v378 = vadd.f32 %v210, %v321
    %v379 = vadd.f32 %v211, %v326
    %v380 = vadd.f32 %v212, %v331
    %v381 = vadd.f32 %v213, %v336
    %v382 = vadd.f32 %v214, %v341
    %v383 = vadd.f32 %v215, %v346
    %v384 = vadd.f32 %v216, %v291
    %v385 = vadd.f32 %v217, %v296
    %v386 = vadd.f32 %v218, %v301
    %v387 = vadd.f32 %v219, %v306
    %v388 = vadd.f32 %v220, %v311
    %v389 = vadd.f32 %v221, %v316
    %v390 = vadd.f32 %v222, %v321
    %v391 = vadd.f32 %v223, %v326
    %v392 = vadd.f32 %v224, %v331
    %v393 = vadd.f32 %v225, %v336
    %v394 = vadd.f32 %v226, %v341
    %v395 = vadd.f32 %v227, %v346
    %v396 = vadd.f32 %v228, %v291
    %v397 = vadd.f32 %v229, %v296
    %v398 = vadd.f32 %v230, %v301
    %v399 = vadd.f32 %v231, %v306
    %v400 = vadd.f32 %v232, %v311
    %v401 = vadd.f32 %v233, %v316
    %v402 = vadd.f32 %v234, %v321
    %v403 = vadd.f32 %v235, %v326
    %v404 = vadd.f32 %v236, %v331
    %v405 = vadd.f32 %v237, %v336
    %v406 = vadd.f32 %v238, %v341
    %v407 = vadd.f32 %v239, %v346
    %v408 = vadd.f32 %v240, %v291
    %v409 = vadd.f32 %v241, %v296
    %v410 = vadd.f32 %v242, %v301
    %v411 = vadd.f32 %v243, %v306
    %v412 = vadd.f32 %v244, %v311
    %v413 = vadd.f32 %v245, %v316
    %v414 = vadd.f32 %v246, %v321
    %v415 = vadd.f32 %v247, %v326
    %v416 = vadd.f32 %v248, %v331
    %v417 = vadd.f32 %v249, %v336
    %v418 = vadd.f32 %v250, %v341
    %v419 = vadd.f32 %v251, %v346
    %v420 = vadd.f32 %v252, %v291
    %v421 = vadd.f32 %v253, %v296
    %v422 = vadd.f32 %v254, %v301
    %v423 = vadd.f32 %v255, %v306
    %v424 = vadd.f32 %v256, %v311
    %v425 = vadd.f32 %v257, %v316
    %v426 = vadd.f32 %v258, %v321
    %v427 = vadd.f32 %v259, %v326
    %v428 = vadd.f32 %v260, %v331
    %v429 = vadd.f32 %v261, %v336
    %v430 = vadd.f32 %v262, %v341
    %v431 = vadd.f32 %v263, %v346
    %v432 = vadd.f32 %v264, %v291
    %v433 = vadd.f32 %v265, %v296
    %v434 = vadd.f32 %v266, %v301
    %v435 = vadd.f32 %v267, %v306
    %v436 = vadd.f32 %v268, %v311
    %v437 = vadd.f32 %v269, %v316
    %v438 = vadd.f32 %v270, %v321
    %v439 = vadd.f32 %v271, %v326
    %v440 = vadd.f32 %v272, %v331
    %v441 = vadd.f32 %v273, %v336
    %v442 = vadd.f32 %v274, %v341
    %v443 = vadd.f32 %v275, %v346
    %445 = vset.pattern.permute.xlu0 0
    %446 = vperm.xlu0 %445, %v40
    %v447 = vpop.permute.xlu0 %446
    %450 = vset.pattern.permute.xlu0 0
    %451 = vperm.xlu0 %450, %v41
    %v452 = vpop.permute.xlu0 %451
    %455 = vset.pattern.permute.xlu0 0
    %456 = vperm.xlu0 %455, %v42
    %v457 = vpop.permute.xlu0 %456
    %460 = vset.pattern.permute.xlu0 0
    %461 = vperm.xlu0 %460, %v43
    %v462 = vpop.permute.xlu0 %461
    %465 = vset.pattern.permute.xlu0 0
    %466 = vperm.xlu0 %465, %v44
    %v467 = vpop.permute.xlu0 %466
    %470 = vset.pattern.permute.xlu0 0
    %471 = vperm.xlu0 %470, %v45
    %v472 = vpop.permute.xlu0 %471
    %475 = vset.pattern.permute.xlu0 0
    %476 = vperm.xlu0 %475, %v46
    %v477 = vpop.permute.xlu0 %476
    %480 = vset.pattern.permute.xlu0 0
    %481 = vperm.xlu0 %480, %v47
    %v482 = vpop.permute.xlu0 %481
    %485 = vset.pattern.permute.xlu0 0
    %486 = vperm.xlu0 %485, %v48
    %v487 = vpop.permute.xlu0 %486
    %490 = vset.pattern.permute.xlu0 0
    %491 = vperm.xlu0 %490, %v49
    %v492 = vpop.permute.xlu0 %491
    %495 = vset.pattern.permute.xlu0 0
    %496 = vperm.xlu0 %495, %v50
    %v497 = vpop.permute.xlu0 %496
    %500 = vset.pattern.permute.xlu0 0
    %501 = vperm.xlu0 %500, %v51
    %v502 = vpop.permute.xlu0 %501
    %vm504 = vcmask 261120
    %v506 = vsel %vm504, %v28, 0
    %v509 = vsel %vm504, %v29, 0
    %v512 = vsel %vm504, %v30, 0
    %v515 = vsel %vm504, %v31, 0
    %v518 = vsel %vm504, %v32, 0
    %v521 = vsel %vm504, %v33, 0
    %v524 = vsel %vm504, %v34, 0
    %v527 = vsel %vm504, %v35, 0
    %v530 = vsel %vm504, %v36, 0
    %v533 = vsel %vm504, %v37, 0
    %v536 = vsel %vm504, %v38, 0
    %v539 = vsel %vm504, %v39, 0
    %541 = vmatprep.subr.mxu0 0.0
    %542 = vmatpush1.msra.mxu0 0.0
    %543 = vmatprep.subr.mxu0 0.0
    %544 = vmatpush1.msra.mxu0 0.0
    %545 = vmatprep.subr.mxu0 0.0
    %546 = vmatpush1.msra.mxu0 0.0
    %547 = vmatprep.subr.mxu0 0.0
    %548 = vmatpush1.msra.mxu0 0.0
    %549 = vmatprep.subr.mxu0 0.0
    %550 = vmatpush1.msra.mxu0 0.0
    %551 = vmatprep.subr.mxu0 0.0
    %552 = vmatpush1.msra.mxu0 0.0
    %553 = vmatprep.subr.mxu0 0.0
    %554 = vmatpush1.msra.mxu0 0.0
    %555 = vmatprep.subr.mxu0 0.0
    %556 = vmatpush1.msra.mxu0 0.0
    %557 = vmatprep.subr.mxu0 0.0
    %558 = vmatpush1.msra.mxu0 0.0
    %559 = vmatprep.subr.mxu0 0.0
    %560 = vmatpush1.msra.mxu0 0.0
    %561 = vmatprep.subr.mxu0 0.0
    %562 = vmatpush1.msra.mxu0 0.0
    %563 = vmatprep.subr.mxu0 0.0
    %564 = vmatpush1.msra.mxu0 0.0
    %565 = vmatprep.subr.mxu0 0.0
    %566 = vmatpush1.msra.mxu0 0.0
    %567 = vmatprep.subr.mxu0 0.0
    %568 = vmatpush1.msra.mxu0 0.0
    %569 = vmatprep.subr.mxu0 0.0
    %570 = vmatpush1.msra.mxu0 0.0
    %571 = vmatprep.subr.mxu0 0.0
    %572 = vmatpush1.msra.mxu0 0.0
    %573 = vmatprep.subr.mxu0 0.0
    %574 = vmatpush2.msra.mxu0 0.0
    %575 = vmatprep.subr.mxu0 0.0
    %576 = vmatpush2.msra.mxu0 0.0
    %577 = vmatprep.subr.mxu0 0.0
    %578 = vmatpush2.msra.mxu0 0.0
    %579 = vmatprep.subr.mxu0 0.0
    %580 = vmatpush2.msra.mxu0 0.0
    %581 = vmatprep.subr.mxu0 0.0
    %582 = vmatpush2.msra.mxu0 0.0
    %583 = vmatprep.subr.mxu0 0.0
    %584 = vmatpush2.msra.mxu0 0.0
    %585 = vmatprep.subr.mxu0 0.0
    %586 = vmatpush2.msra.mxu0 0.0
    %587 = vmatprep.subr.mxu0 0.0
    %588 = vmatpush2.msra.mxu0 0.0
    %589 = vmatprep.subr.mxu0 0.0
    %590 = vmatpush2.msra.mxu0 0.0
    %591 = vmatprep.subr.mxu0 0.0
    %592 = vmatpush2.msra.mxu0 0.0
    %593 = vmatprep.subr.mxu0 0.0
    %594 = vmatpush2.msra.mxu0 0.0
    %595 = vmatprep.subr.mxu0 0.0
    %596 = vmatpush2.msra.mxu0 0.0
    %597 = vmatprep.subr.mxu0 0.0
    %598 = vmatpush2.msra.mxu0 0.0
    %599 = vmatprep.subr.mxu0 0.0
    %600 = vmatpush2.msra.mxu0 0.0
    %601 = vmatprep.subr.mxu0 0.0
    %602 = vmatpush2.msra.mxu0 0.0
    %603 = vmatprep.subr.mxu0 0.0
    %604 = vmatpush2.msra.mxu0 0.0
    %605 = vmatprep.mubr.f32.mxu0 0.0
    %606 = vmatmul.mubr.f32.gmra.mxu0 %v506
    %v607 = vpop.f32.mrf.mxu0
    %v608 = vadd.f32 %v447, %v607
    %v609 = vpop.f32.mrf.mxu0
    %610 = vmatprep.mubr.f32.mxu0 0.0
    %611 = vmatmul.mubr.f32.gmra.mxu0 %v509
    %v612 = vpop.f32.mrf.mxu0
    %v613 = vadd.f32 %v452, %v612
    %v614 = vpop.f32.mrf.mxu0
    %615 = vmatprep.mubr.f32.mxu0 0.0
    %616 = vmatmul.mubr.f32.gmra.mxu0 %v512
    %v617 = vpop.f32.mrf.mxu0
    %v618 = vadd.f32 %v457, %v617
    %v619 = vpop.f32.mrf.mxu0
    %620 = vmatprep.mubr.f32.mxu0 0.0
    %621 = vmatmul.mubr.f32.gmra.mxu0 %v515
    %v622 = vpop.f32.mrf.mxu0
    %v623 = vadd.f32 %v462, %v622
    %v624 = vpop.f32.mrf.mxu0
    %625 = vmatprep.mubr.f32.mxu0 0.0
    %626 = vmatmul.mubr.f32.gmra.mxu0 %v518
    %v627 = vpop.f32.mrf.mxu0
    %v628 = vadd.f32 %v467, %v627
    %v629 = vpop.f32.mrf.mxu0
    %630 = vmatprep.mubr.f32.mxu0 0.0
    %631 = vmatmul.mubr.f32.gmra.mxu0 %v521
    %v632 = vpop.f32.mrf.mxu0
    %v633 = vadd.f32 %v472, %v632
    %v634 = vpop.f32.mrf.mxu0
    %635 = vmatprep.mubr.f32.mxu0 0.0
    %636 = vmatmul.mubr.f32.gmra.mxu0 %v524
    %v637 = vpop.f32.mrf.mxu0
    %v638 = vadd.f32 %v477, %v637
    %v639 = vpop.f32.mrf.mxu0
    %640 = vmatprep.mubr.f32.mxu0 0.0
    %641 = vmatmul.mubr.f32.gmra.mxu0 %v527
    %v642 = vpop.f32.mrf.mxu0
    %v643 = vadd.f32 %v482, %v642
    %v644 = vpop.f32.mrf.mxu0
    %645 = vmatprep.mubr.f32.mxu0 0.0
    %646 = vmatmul.mubr.f32.gmra.mxu0 %v530
    %v647 = vpop.f32.mrf.mxu0
    %v648 = vadd.f32 %v487, %v647
    %v649 = vpop.f32.mrf.mxu0
    %650 = vmatprep.mubr.f32.mxu0 0.0
    %651 = vmatmul.mubr.f32.gmra.mxu0 %v533
    %v652 = vpop.f32.mrf.mxu0
    %v653 = vadd.f32 %v492, %v652
    %v654 = vpop.f32.mrf.mxu0
    %655 = vmatprep.mubr.f32.mxu0 0.0
    %656 = vmatmul.mubr.f32.gmra.mxu0 %v536
    %v657 = vpop.f32.mrf.mxu0
    %v658 = vadd.f32 %v497, %v657
    %v659 = vpop.f32.mrf.mxu0
    %660 = vmatprep.mubr.f32.mxu0 0.0
    %661 = vmatmul.mubr.f32.gmra.mxu0 %v539
    %v662 = vpop.f32.mrf.mxu0
    %v663 = vadd.f32 %v502, %v662
    %v664 = vpop.f32.mrf.mxu0
    %665 = vdwg.mxu0
    %v666 = vadd.f32 %v348, %v608
    %v667 = vadd.f32 %v349, %v613
    %v668 = vadd.f32 %v350, %v618
    %v669 = vadd.f32 %v351, %v623
    %v670 = vxor.u32 %v666, 2147483648
    %v671 = vxor.u32 %v667, 2147483648
    %v672 = vxor.u32 %v668, 2147483648
    %v673 = vxor.u32 %v669, 2147483648
    %v674 = vmul.f32 %v670, 1.442695
    %v675 = vpow.pop %v674
    %v676 = vmul.f32 %v671, 1.442695
    %v677 = vpow.pop %v676
    %v678 = vmul.f32 %v672, 1.442695
    %v679 = vpow.pop %v678
    %v680 = vmul.f32 %v673, 1.442695
    %v681 = vpow.pop %v680
    %v682 = vadd.f32 %v675, 1.0
    %v683 = vadd.f32 %v677, 1.0
    %v684 = vadd.f32 %v679, 1.0
    %v685 = vadd.f32 %v681, 1.0
    %v686 = vrcp.pop %v682
    %v687 = vmul.f32 1.0, %v686
    %v688 = vrcp.pop %v683
    %v689 = vmul.f32 1.0, %v688
    %v690 = vrcp.pop %v684
    %v691 = vmul.f32 1.0, %v690
    %v692 = vrcp.pop %v685
    %v693 = vmul.f32 1.0, %v692
    %v694 = vadd.f32 %v352, %v628
    %v695 = vadd.f32 %v353, %v633
    %v696 = vadd.f32 %v354, %v638
    %v697 = vadd.f32 %v355, %v643
    %v698 = vxor.u32 %v694, 2147483648
    %v699 = vxor.u32 %v695, 2147483648
    %v700 = vxor.u32 %v696, 2147483648
    %v701 = vxor.u32 %v697, 2147483648
    %v702 = vmul.f32 %v698, 1.442695
    %v703 = vpow.pop %v702
    %v704 = vmul.f32 %v699, 1.442695
    %v705 = vpow.pop %v704
    %v706 = vmul.f32 %v700, 1.442695
    %v707 = vpow.pop %v706
    %v708 = vmul.f32 %v701, 1.442695
    %v709 = vpow.pop %v708
    %v710 = vadd.f32 %v703, 1.0
    %v711 = vadd.f32 %v705, 1.0
    %v712 = vadd.f32 %v707, 1.0
    %v713 = vadd.f32 %v709, 1.0
    %v714 = vrcp.pop %v710
    %v715 = vmul.f32 1.0, %v714
    %v716 = vrcp.pop %v711
    %v717 = vmul.f32 1.0, %v716
    %v718 = vrcp.pop %v712
    %v719 = vmul.f32 1.0, %v718
    %v720 = vrcp.pop %v713
    %v721 = vmul.f32 1.0, %v720
    %v722 = vmul.f32 %v687, %v648
    %v723 = vmul.f32 %v689, %v653
    %v724 = vmul.f32 %v691, %v658
    %v725 = vmul.f32 %v693, %v663
    %v726 = vadd.f32 %v356, %v722
    %v727 = vadd.f32 %v357, %v723
    %v728 = vadd.f32 %v358, %v724
    %v729 = vadd.f32 %v359, %v725
    %v730 = vtanh.pop %v726
    %v731 = vtanh.pop %v727
    %v732 = vtanh.pop %v728
    %v733 = vtanh.pop %v729
    %v734 = vsub.f32 1.0, %v715
    %v735 = vsub.f32 1.0, %v717
    %v736 = vsub.f32 1.0, %v719
    %v737 = vsub.f32 1.0, %v721
    %v738 = vmul.f32 %v734, %v730
    %v739 = vmul.f32 %v735, %v731
    %v740 = vmul.f32 %v736, %v732
    %v741 = vmul.f32 %v737, %v733
    %v742 = vmul.f32 %v715, 0.0
    %v743 = vmul.f32 %v717, 0.0
    %v744 = vmul.f32 %v719, 0.0
    %v745 = vmul.f32 %v721, 0.0
    %v746 = vadd.f32 %v738, %v742
    %v747 = vadd.f32 %v739, %v743
    %v748 = vadd.f32 %v740, %v744
    %v749 = vadd.f32 %v741, %v745
    %vm750 = vcmask 64512
    %751 = vst.msk [vmem:[#allocation2] sm:$0xff] %vm750, %v746
    %752 = vst.msk [vmem:[#allocation2 + $0x8] sm:$0xff] %vm750, %v747
    %753 = vst.msk [vmem:[#allocation2 + $0x10] sm:$0xff] %vm750, %v748
    %754 = vst.msk [vmem:[#allocation2 + $0x18] sm:$0xff] %vm750, %v749
    %755 = vmatprep.subr.mxu0 0.0
    %756 = vmatpush1.msra.mxu0 0.0
    %757 = vmatprep.subr.mxu0 0.0
    %758 = vmatpush1.msra.mxu0 0.0
    %759 = vmatprep.subr.mxu0 0.0
    %760 = vmatpush1.msra.mxu0 0.0
    %761 = vmatprep.subr.mxu0 0.0
    %762 = vmatpush1.msra.mxu0 0.0
    %763 = vmatprep.subr.mxu0 0.0
    %764 = vmatpush1.msra.mxu0 0.0
    %765 = vmatprep.subr.mxu0 0.0
    %766 = vmatpush1.msra.mxu0 0.0
    %767 = vmatprep.subr.mxu0 0.0
    %768 = vmatpush1.msra.mxu0 0.0
    %769 = vmatprep.subr.mxu0 0.0
    %770 = vmatpush1.msra.mxu0 0.0
    %771 = vmatprep.subr.mxu0 0.0
    %772 = vmatpush1.msra.mxu0 0.0
    %773 = vmatprep.subr.mxu0 0.0
    %774 = vmatpush1.msra.mxu0 0.0
    %775 = vmatprep.subr.mxu0 0.0
    %776 = vmatpush1.msra.mxu0 0.0
    %777 = vmatprep.subr.mxu0 0.0
    %778 = vmatpush1.msra.mxu0 0.0
    %779 = vmatprep.subr.mxu0 0.0
    %780 = vmatpush1.msra.mxu0 %v749
    %781 = vmatprep.subr.mxu0 0.0
    %782 = vmatpush1.msra.mxu0 %v748
    %783 = vmatprep.subr.mxu0 0.0
    %784 = vmatpush1.msra.mxu0 %v747
    %785 = vmatprep.subr.mxu0 0.0
    %786 = vmatpush1.msra.mxu0 %v746
    %787 = vmatprep.subr.mxu0 0.0
    %788 = vmatpush2.msra.mxu0 0.0
    %789 = vmatprep.subr.mxu0 0.0
    %790 = vmatpush2.msra.mxu0 0.0
    %791 = vmatprep.subr.mxu0 0.0
    %792 = vmatpush2.msra.mxu0 0.0
    %793 = vmatprep.subr.mxu0 0.0
    %794 = vmatpush2.msra.mxu0 0.0
    %795 = vmatprep.subr.mxu0 0.0
    %796 = vmatpush2.msra.mxu0 0.0
    %797 = vmatprep.subr.mxu0 0.0
    %798 = vmatpush2.msra.mxu0 0.0
    %799 = vmatprep.subr.mxu0 0.0
    %800 = vmatpush2.msra.mxu0 0.0
    %801 = vmatprep.subr.mxu0 0.0
    %802 = vmatpush2.msra.mxu0 0.0
    %803 = vmatprep.subr.mxu0 0.0
    %804 = vmatpush2.msra.mxu0 0.0
    %805 = vmatprep.subr.mxu0 0.0
    %806 = vmatpush2.msra.mxu0 0.0
    %807 = vmatprep.subr.mxu0 0.0
    %808 = vmatpush2.msra.mxu0 0.0
    %809 = vmatprep.subr.mxu0 0.0
    %810 = vmatpush2.msra.mxu0 0.0
    %811 = vmatprep.subr.mxu0 0.0
    %812 = vmatpush2.msra.mxu0 0.0
    %813 = vmatprep.subr.mxu0 0.0
    %814 = vmatpush2.msra.mxu0 0.0
    %815 = vmatprep.subr.mxu0 0.0
    %816 = vmatpush2.msra.mxu0 0.0
    %817 = vmatprep.subr.mxu0 0.0
    %818 = vmatpush2.msra.mxu0 0.0
    %819 = vmatprep.mubr.f32.mxu0 0.0
    %820 = vmatmul.mubr.f32.gmra.mxu0 %v506
    %v821 = vpop.f32.mrf.mxu0
    %v822 = vadd.f32 %v447, %v821
    %v823 = vpop.f32.mrf.mxu0
    %824 = vmatprep.mubr.f32.mxu0 0.0
    %825 = vmatmul.mubr.f32.gmra.mxu0 %v509
    %v826 = vpop.f32.mrf.mxu0
    %v827 = vadd.f32 %v452, %v826
    %v828 = vpop.f32.mrf.mxu0
    %829 = vmatprep.mubr.f32.mxu0 0.0
    %830 = vmatmul.mubr.f32.gmra.mxu0 %v512
    %v831 = vpop.f32.mrf.mxu0
    %v832 = vadd.f32 %v457, %v831
    %v833 = vpop.f32.mrf.mxu0
    %834 = vmatprep.mubr.f32.mxu0 0.0
    %835 = vmatmul.mubr.f32.gmra.mxu0 %v515
    %v836 = vpop.f32.mrf.mxu0
    %v837 = vadd.f32 %v462, %v836
    %v838 = vpop.f32.mrf.mxu0
    %839 = vmatprep.mubr.f32.mxu0 0.0
    %840 = vmatmul.mubr.f32.gmra.mxu0 %v518
    %v841 = vpop.f32.mrf.mxu0
    %v842 = vadd.f32 %v467, %v841
    %v843 = vpop.f32.mrf.mxu0
    %844 = vmatprep.mubr.f32.mxu0 0.0
    %845 = vmatmul.mubr.f32.gmra.mxu0 %v521
    %v846 = vpop.f32.mrf.mxu0
    %v847 = vadd.f32 %v472, %v846
    %v848 = vpop.f32.mrf.mxu0
    %849 = vmatprep.mubr.f32.mxu0 0.0
    %850 = vmatmul.mubr.f32.gmra.mxu0 %v524
    %v851 = vpop.f32.mrf.mxu0
    %v852 = vadd.f32 %v477, %v851
    %v853 = vpop.f32.mrf.mxu0
    %854 = vmatprep.mubr.f32.mxu0 0.0
    %855 = vmatmul.mubr.f32.gmra.mxu0 %v527
    %v856 = vpop.f32.mrf.mxu0
    %v857 = vadd.f32 %v482, %v856
    %v858 = vpop.f32.mrf.mxu0
    %859 = vmatprep.mubr.f32.mxu0 0.0
    %860 = vmatmul.mubr.f32.gmra.mxu0 %v530
    %v861 = vpop.f32.mrf.mxu0
    %v862 = vadd.f32 %v487, %v861
    %v863 = vpop.f32.mrf.mxu0
    %864 = vmatprep.mubr.f32.mxu0 0.0
    %865 = vmatmul.mubr.f32.gmra.mxu0 %v533
    %v866 = vpop.f32.mrf.mxu0
    %v867 = vadd.f32 %v492, %v866
    %v868 = vpop.f32.mrf.mxu0
    %869 = vmatprep.mubr.f32.mxu0 0.0
    %870 = vmatmul.mubr.f32.gmra.mxu0 %v536
    %v871 = vpop.f32.mrf.mxu0
    %v872 = vadd.f32 %v497, %v871
    %v873 = vpop.f32.mrf.mxu0
    %874 = vmatprep.mubr.f32.mxu0 0.0
    %875 = vmatmul.mubr.f32.gmra.mxu0 %v539
    %v876 = vpop.f32.mrf.mxu0
    %v877 = vadd.f32 %v502, %v876
    %v878 = vpop.f32.mrf.mxu0
    %879 = vdwg.mxu0
    %v880 = vadd.f32 %v360, %v822
    %v881 = vadd.f32 %v361, %v827
    %v882 = vadd.f32 %v362, %v832
    %v883 = vadd.f32 %v363, %v837
    %v884 = vxor.u32 %v880, 2147483648
    %v885 = vxor.u32 %v881, 2147483648
    %v886 = vxor.u32 %v882, 2147483648
    %v887 = vxor.u32 %v883, 2147483648
    %v888 = vmul.f32 %v884, 1.442695
    %v889 = vpow.pop %v888
    %v890 = vmul.f32 %v885, 1.442695
    %v891 = vpow.pop %v890
    %v892 = vmul.f32 %v886, 1.442695
    %v893 = vpow.pop %v892
    %v894 = vmul.f32 %v887, 1.442695
    %v895 = vpow.pop %v894
    %v896 = vadd.f32 %v889, 1.0
    %v897 = vadd.f32 %v891, 1.0
    %v898 = vadd.f32 %v893, 1.0
    %v899 = vadd.f32 %v895, 1.0
    %v900 = vrcp.pop %v896
    %v901 = vmul.f32 1.0, %v900
    %v902 = vrcp.pop %v897
    %v903 = vmul.f32 1.0, %v902
    %v904 = vrcp.pop %v898
    %v905 = vmul.f32 1.0, %v904
    %v906 = vrcp.pop %v899
    %v907 = vmul.f32 1.0, %v906
    %v908 = vadd.f32 %v364, %v842
    %v909 = vadd.f32 %v365, %v847
    %v910 = vadd.f32 %v366, %v852
    %v911 = vadd.f32 %v367, %v857
    %v912 = vxor.u32 %v908, 2147483648
    %v913 = vxor.u32 %v909, 2147483648
    %v914 = vxor.u32 %v910, 2147483648
    %v915 = vxor.u32 %v911, 2147483648
    %v916 = vmul.f32 %v912, 1.442695
    %v917 = vpow.pop %v916
    %v918 = vmul.f32 %v913, 1.442695
    %v919 = vpow.pop %v918
    %v920 = vmul.f32 %v914, 1.442695
    %v921 = vpow.pop %v920
    %v922 = vmul.f32 %v915, 1.442695
    %v923 = vpow.pop %v922
    %v924 = vadd.f32 %v917, 1.0
    %v925 = vadd.f32 %v919, 1.0
    %v926 = vadd.f32 %v921, 1.0
    %v927 = vadd.f32 %v923, 1.0
    %v928 = vrcp.pop %v924
    %v929 = vmul.f32 1.0, %v928
    %v930 = vrcp.pop %v925
    %v931 = vmul.f32 1.0, %v930
    %v932 = vrcp.pop %v926
    %v933 = vmul.f32 1.0, %v932
    %v934 = vrcp.pop %v927
    %v935 = vmul.f32 1.0, %v934
    %v936 = vmul.f32 %v901, %v862
    %v937 = vmul.f32 %v903, %v867
    %v938 = vmul.f32 %v905, %v872
    %v939 = vmul.f32 %v907, %v877
    %v940 = vadd.f32 %v368, %v936
    %v941 = vadd.f32 %v369, %v937
    %v942 = vadd.f32 %v370, %v938
    %v943 = vadd.f32 %v371, %v939
    %v944 = vtanh.pop %v940
    %v945 = vtanh.pop %v941
    %v946 = vtanh.pop %v942
    %v947 = vtanh.pop %v943
    %v948 = vsub.f32 1.0, %v929
    %v949 = vsub.f32 1.0, %v931
    %v950 = vsub.f32 1.0, %v933
    %v951 = vsub.f32 1.0, %v935
    %v952 = vmul.f32 %v948, %v944
    %v953 = vmul.f32 %v949, %v945
    %v954 = vmul.f32 %v950, %v946
    %v955 = vmul.f32 %v951, %v947
    %v956 = vmul.f32 %v929, %v746
    %v957 = vmul.f32 %v931, %v747
    %v958 = vmul.f32 %v933, %v748
    %v959 = vmul.f32 %v935, %v749
    %v960 = vadd.f32 %v952, %v956
    %v961 = vadd.f32 %v953, %v957
    %v962 = vadd.f32 %v954, %v958
    %v963 = vadd.f32 %v955, %v959
    %s964 = scalar_lea.vmem [#allocation2], 32
    %965 = vst.msk [vmem:[%s964] sm:$0xff] %vm750, %v960
    %966 = vst.msk [vmem:[%s964 + $0x8] sm:$0xff] %vm750, %v961
    %967 = vst.msk [vmem:[%s964 + $0x10] sm:$0xff] %vm750, %v962
    %968 = vst.msk [vmem:[%s964 + $0x18] sm:$0xff] %vm750, %v963
    %969 = vmatprep.subr.mxu0 0.0
    %970 = vmatpush1.msra.mxu0 0.0
    %971 = vmatprep.subr.mxu0 0.0
    %972 = vmatpush1.msra.mxu0 0.0
    %973 = vmatprep.subr.mxu0 0.0
    %974 = vmatpush1.msra.mxu0 0.0
    %975 = vmatprep.subr.mxu0 0.0
    %976 = vmatpush1.msra.mxu0 0.0
    %977 = vmatprep.subr.mxu0 0.0
    %978 = vmatpush1.msra.mxu0 0.0
    %979 = vmatprep.subr.mxu0 0.0
    %980 = vmatpush1.msra.mxu0 0.0
    %981 = vmatprep.subr.mxu0 0.0
    %982 = vmatpush1.msra.mxu0 0.0
    %983 = vmatprep.subr.mxu0 0.0
    %984 = vmatpush1.msra.mxu0 0.0
    %985 = vmatprep.subr.mxu0 0.0
    %986 = vmatpush1.msra.mxu0 0.0
    %987 = vmatprep.subr.mxu0 0.0
    %988 = vmatpush1.msra.mxu0 0.0
    %989 = vmatprep.subr.mxu0 0.0
    %990 = vmatpush1.msra.mxu0 0.0
    %991 = vmatprep.subr.mxu0 0.0
    %992 = vmatpush1.msra.mxu0 0.0
    %993 = vmatprep.subr.mxu0 0.0
    %994 = vmatpush1.msra.mxu0 %v963
    %995 = vmatprep.subr.mxu0 0.0
    %996 = vmatpush1.msra.mxu0 %v962
    %997 = vmatprep.subr.mxu0 0.0
    %998 = vmatpush1.msra.mxu0 %v961
    %999 = vmatprep.subr.mxu0 0.0
    %1000 = vmatpush1.msra.mxu0 %v960
    %1001 = vmatprep.subr.mxu0 0.0
    %1002 = vmatpush2.msra.mxu0 0.0
    %1003 = vmatprep.subr.mxu0 0.0
    %1004 = vmatpush2.msra.mxu0 0.0
    %1005 = vmatprep.subr.mxu0 0.0
    %1006 = vmatpush2.msra.mxu0 0.0
    %1007 = vmatprep.subr.mxu0 0.0
    %1008 = vmatpush2.msra.mxu0 0.0
    %1009 = vmatprep.subr.mxu0 0.0
    %1010 = vmatpush2.msra.mxu0 0.0
    %1011 = vmatprep.subr.mxu0 0.0
    %1012 = vmatpush2.msra.mxu0 0.0
    %1013 = vmatprep.subr.mxu0 0.0
    %1014 = vmatpush2.msra.mxu0 0.0
    %1015 = vmatprep.subr.mxu0 0.0
    %1016 = vmatpush2.msra.mxu0 0.0
    %1017 = vmatprep.subr.mxu0 0.0
    %1018 = vmatpush2.msra.mxu0 0.0
    %1019 = vmatprep.subr.mxu0 0.0
    %1020 = vmatpush2.msra.mxu0 0.0
    %1021 = vmatprep.subr.mxu0 0.0
    %1022 = vmatpush2.msra.mxu0 0.0
    %1023 = vmatprep.subr.mxu0 0.0
    %1024 = vmatpush2.msra.mxu0 0.0
    %1025 = vmatprep.subr.mxu0 0.0
    %1026 = vmatpush2.msra.mxu0 0.0
    %1027 = vmatprep.subr.mxu0 0.0
    %1028 = vmatpush2.msra.mxu0 0.0
    %1029 = vmatprep.subr.mxu0 0.0
    %1030 = vmatpush2.msra.mxu0 0.0
    %1031 = vmatprep.subr.mxu0 0.0
    %1032 = vmatpush2.msra.mxu0 0.0
    %1033 = vmatprep.mubr.f32.mxu0 0.0
    %1034 = vmatmul.mubr.f32.gmra.mxu0 %v506
    %v1035 = vpop.f32.mrf.mxu0
    %v1036 = vadd.f32 %v447, %v1035
    %v1037 = vpop.f32.mrf.mxu0
    %1038 = vmatprep.mubr.f32.mxu0 0.0
    %1039 = vmatmul.mubr.f32.gmra.mxu0 %v509
    %v1040 = vpop.f32.mrf.mxu0
    %v1041 = vadd.f32 %v452, %v1040
    %v1042 = vpop.f32.mrf.mxu0
    %1043 = vmatprep.mubr.f32.mxu0 0.0
    %1044 = vmatmul.mubr.f32.gmra.mxu0 %v512
    %v1045 = vpop.f32.mrf.mxu0
    %v1046 = vadd.f32 %v457, %v1045
    %v1047 = vpop.f32.mrf.mxu0
    %1048 = vmatprep.mubr.f32.mxu0 0.0
    %1049 = vmatmul.mubr.f32.gmra.mxu0 %v515
    %v1050 = vpop.f32.mrf.mxu0
    %v1051 = vadd.f32 %v462, %v1050
    %v1052 = vpop.f32.mrf.mxu0
    %1053 = vmatprep.mubr.f32.mxu0 0.0
    %1054 = vmatmul.mubr.f32.gmra.mxu0 %v518
    %v1055 = vpop.f32.mrf.mxu0
    %v1056 = vadd.f32 %v467, %v1055
    %v1057 = vpop.f32.mrf.mxu0
    %1058 = vmatprep.mubr.f32.mxu0 0.0
    %1059 = vmatmul.mubr.f32.gmra.mxu0 %v521
    %v1060 = vpop.f32.mrf.mxu0
    %v1061 = vadd.f32 %v472, %v1060
    %v1062 = vpop.f32.mrf.mxu0
    %1063 = vmatprep.mubr.f32.mxu0 0.0
    %1064 = vmatmul.mubr.f32.gmra.mxu0 %v524
    %v1065 = vpop.f32.mrf.mxu0
    %v1066 = vadd.f32 %v477, %v1065
    %v1067 = vpop.f32.mrf.mxu0
    %1068 = vmatprep.mubr.f32.mxu0 0.0
    %1069 = vmatmul.mubr.f32.gmra.mxu0 %v527
    %v1070 = vpop.f32.mrf.mxu0
    %v1071 = vadd.f32 %v482, %v1070
    %v1072 = vpop.f32.mrf.mxu0
    %1073 = vmatprep.mubr.f32.mxu0 0.0
    %1074 = vmatmul.mubr.f32.gmra.mxu0 %v530
    %v1075 = vpop.f32.mrf.mxu0
    %v1076 = vadd.f32 %v487, %v1075
    %v1077 = vpop.f32.mrf.mxu0
    %1078 = vmatprep.mubr.f32.mxu0 0.0
    %1079 = vmatmul.mubr.f32.gmra.mxu0 %v533
    %v1080 = vpop.f32.mrf.mxu0
    %v1081 = vadd.f32 %v492, %v1080
    %v1082 = vpop.f32.mrf.mxu0
    %1083 = vmatprep.mubr.f32.mxu0 0.0
    %1084 = vmatmul.mubr.f32.gmra.mxu0 %v536
    %v1085 = vpop.f32.mrf.mxu0
    %v1086 = vadd.f32 %v497, %v1085
    %v1087 = vpop.f32.mrf.mxu0
    %1088 = vmatprep.mubr.f32.mxu0 0.0
    %1089 = vmatmul.mubr.f32.gmra.mxu0 %v539
    %v1090 = vpop.f32.mrf.mxu0
    %v1091 = vadd.f32 %v502, %v1090
    %v1092 = vpop.f32.mrf.mxu0
    %1093 = vdwg.mxu0
    %v1094 = vadd.f32 %v372, %v1036
    %v1095 = vadd.f32 %v373, %v1041
    %v1096 = vadd.f32 %v374, %v1046
    %v1097 = vadd.f32 %v375, %v1051
    %v1098 = vxor.u32 %v1094, 2147483648
    %v1099 = vxor.u32 %v1095, 2147483648
    %v1100 = vxor.u32 %v1096, 2147483648
    %v1101 = vxor.u32 %v1097, 2147483648
    %v1102 = vmul.f32 %v1098, 1.442695
    %v1103 = vpow.pop %v1102
    %v1104 = vmul.f32 %v1099, 1.442695
    %v1105 = vpow.pop %v1104
    %v1106 = vmul.f32 %v1100, 1.442695
    %v1107 = vpow.pop %v1106
    %v1108 = vmul.f32 %v1101, 1.442695
    %v1109 = vpow.pop %v1108
    %v1110 = vadd.f32 %v1103, 1.0
    %v1111 = vadd.f32 %v1105, 1.0
    %v1112 = vadd.f32 %v1107, 1.0
    %v1113 = vadd.f32 %v1109, 1.0
    %v1114 = vrcp.pop %v1110
    %v1115 = vmul.f32 1.0, %v1114
    %v1116 = vrcp.pop %v1111
    %v1117 = vmul.f32 1.0, %v1116
    %v1118 = vrcp.pop %v1112
    %v1119 = vmul.f32 1.0, %v1118
    %v1120 = vrcp.pop %v1113
    %v1121 = vmul.f32 1.0, %v1120
    %v1122 = vadd.f32 %v376, %v1056
    %v1123 = vadd.f32 %v377, %v1061
    %v1124 = vadd.f32 %v378, %v1066
    %v1125 = vadd.f32 %v379, %v1071
    %v1126 = vxor.u32 %v1122, 2147483648
    %v1127 = vxor.u32 %v1123, 2147483648
    %v1128 = vxor.u32 %v1124, 2147483648
    %v1129 = vxor.u32 %v1125, 2147483648
    %v1130 = vmul.f32 %v1126, 1.442695
    %v1131 = vpow.pop %v1130
    %v1132 = vmul.f32 %v1127, 1.442695
    %v1133 = vpow.pop %v1132
    %v1134 = vmul.f32 %v1128, 1.442695
    %v1135 = vpow.pop %v1134
    %v1136 = vmul.f32 %v1129, 1.442695
    %v1137 = vpow.pop %v1136
    %v1138 = vadd.f32 %v1131, 1.0
    %v1139 = vadd.f32 %v1133, 1.0
    %v1140 = vadd.f32 %v1135, 1.0
    %v1141 = vadd.f32 %v1137, 1.0
    %v1142 = vrcp.pop %v1138
    %v1143 = vmul.f32 1.0, %v1142
    %v1144 = vrcp.pop %v1139
    %v1145 = vmul.f32 1.0, %v1144
    %v1146 = vrcp.pop %v1140
    %v1147 = vmul.f32 1.0, %v1146
    %v1148 = vrcp.pop %v1141
    %v1149 = vmul.f32 1.0, %v1148
    %v1150 = vmul.f32 %v1115, %v1076
    %v1151 = vmul.f32 %v1117, %v1081
    %v1152 = vmul.f32 %v1119, %v1086
    %v1153 = vmul.f32 %v1121, %v1091
    %v1154 = vadd.f32 %v380, %v1150
    %v1155 = vadd.f32 %v381, %v1151
    %v1156 = vadd.f32 %v382, %v1152
    %v1157 = vadd.f32 %v383, %v1153
    %v1158 = vtanh.pop %v1154
    %v1159 = vtanh.pop %v1155
    %v1160 = vtanh.pop %v1156
    %v1161 = vtanh.pop %v1157
    %v1162 = vsub.f32 1.0, %v1143
    %v1163 = vsub.f32 1.0, %v1145
    %v1164 = vsub.f32 1.0, %v1147
    %v1165 = vsub.f32 1.0, %v1149
    %v1166 = vmul.f32 %v1162, %v1158
    %v1167 = vmul.f32 %v1163, %v1159
    %v1168 = vmul.f32 %v1164, %v1160
    %v1169 = vmul.f32 %v1165, %v1161
    %v1170 = vmul.f32 %v1143, %v960
    %v1171 = vmul.f32 %v1145, %v961
    %v1172 = vmul.f32 %v1147, %v962
    %v1173 = vmul.f32 %v1149, %v963
    %v1174 = vadd.f32 %v1166, %v1170
    %v1175 = vadd.f32 %v1167, %v1171
    %v1176 = vadd.f32 %v1168, %v1172
    %v1177 = vadd.f32 %v1169, %v1173
    %s1178 = scalar_lea.vmem [#allocation2], 64
    %1179 = vst.msk [vmem:[%s1178] sm:$0xff] %vm750, %v1174
    %1180 = vst.msk [vmem:[%s1178 + $0x8] sm:$0xff] %vm750, %v1175
    %1181 = vst.msk [vmem:[%s1178 + $0x10] sm:$0xff] %vm750, %v1176
    %1182 = vst.msk [vmem:[%s1178 + $0x18] sm:$0xff] %vm750, %v1177
    %1183 = vmatprep.subr.mxu0 0.0
    %1184 = vmatpush1.msra.mxu0 0.0
    %1185 = vmatprep.subr.mxu0 0.0
    %1186 = vmatpush1.msra.mxu0 0.0
    %1187 = vmatprep.subr.mxu0 0.0
    %1188 = vmatpush1.msra.mxu0 0.0
    %1189 = vmatprep.subr.mxu0 0.0
    %1190 = vmatpush1.msra.mxu0 0.0
    %1191 = vmatprep.subr.mxu0 0.0
    %1192 = vmatpush1.msra.mxu0 0.0
    %1193 = vmatprep.subr.mxu0 0.0
    %1194 = vmatpush1.msra.mxu0 0.0
    %1195 = vmatprep.subr.mxu0 0.0
    %1196 = vmatpush1.msra.mxu0 0.0
    %1197 = vmatprep.subr.mxu0 0.0
    %1198 = vmatpush1.msra.mxu0 0.0
    %1199 = vmatprep.subr.mxu0 0.0
    %1200 = vmatpush1.msra.mxu0 0.0
    %1201 = vmatprep.subr.mxu0 0.0
    %1202 = vmatpush1.msra.mxu0 0.0
    %1203 = vmatprep.subr.mxu0 0.0
    %1204 = vmatpush1.msra.mxu0 0.0
    %1205 = vmatprep.subr.mxu0 0.0
    %1206 = vmatpush1.msra.mxu0 0.0
    %1207 = vmatprep.subr.mxu0 0.0
    %1208 = vmatpush1.msra.mxu0 %v1177
    %1209 = vmatprep.subr.mxu0 0.0
    %1210 = vmatpush1.msra.mxu0 %v1176
    %1211 = vmatprep.subr.mxu0 0.0
    %1212 = vmatpush1.msra.mxu0 %v1175
    %1213 = vmatprep.subr.mxu0 0.0
    %1214 = vmatpush1.msra.mxu0 %v1174
    %1215 = vmatprep.subr.mxu0 0.0
    %1216 = vmatpush2.msra.mxu0 0.0
    %1217 = vmatprep.subr.mxu0 0.0
    %1218 = vmatpush2.msra.mxu0 0.0
    %1219 = vmatprep.subr.mxu0 0.0
    %1220 = vmatpush2.msra.mxu0 0.0
    %1221 = vmatprep.subr.mxu0 0.0
    %1222 = vmatpush2.msra.mxu0 0.0
    %1223 = vmatprep.subr.mxu0 0.0
    %1224 = vmatpush2.msra.mxu0 0.0
    %1225 = vmatprep.subr.mxu0 0.0
    %1226 = vmatpush2.msra.mxu0 0.0
    %1227 = vmatprep.subr.mxu0 0.0
    %1228 = vmatpush2.msra.mxu0 0.0
    %1229 = vmatprep.subr.mxu0 0.0
    %1230 = vmatpush2.msra.mxu0 0.0
    %1231 = vmatprep.subr.mxu0 0.0
    %1232 = vmatpush2.msra.mxu0 0.0
    %1233 = vmatprep.subr.mxu0 0.0
    %1234 = vmatpush2.msra.mxu0 0.0
    %1235 = vmatprep.subr.mxu0 0.0
    %1236 = vmatpush2.msra.mxu0 0.0
    %1237 = vmatprep.subr.mxu0 0.0
    %1238 = vmatpush2.msra.mxu0 0.0
    %1239 = vmatprep.subr.mxu0 0.0
    %1240 = vmatpush2.msra.mxu0 0.0
    %1241 = vmatprep.subr.mxu0 0.0
    %1242 = vmatpush2.msra.mxu0 0.0
    %1243 = vmatprep.subr.mxu0 0.0
    %1244 = vmatpush2.msra.mxu0 0.0
    %1245 = vmatprep.subr.mxu0 0.0
    %1246 = vmatpush2.msra.mxu0 0.0
    %1247 = vmatprep.mubr.f32.mxu0 0.0
    %1248 = vmatmul.mubr.f32.gmra.mxu0 %v506
    %v1249 = vpop.f32.mrf.mxu0
    %v1250 = vadd.f32 %v447, %v1249
    %v1251 = vpop.f32.mrf.mxu0
    %1252 = vmatprep.mubr.f32.mxu0 0.0
    %1253 = vmatmul.mubr.f32.gmra.mxu0 %v509
    %v1254 = vpop.f32.mrf.mxu0
    %v1255 = vadd.f32 %v452, %v1254
    %v1256 = vpop.f32.mrf.mxu0
    %1257 = vmatprep.mubr.f32.mxu0 0.0
    %1258 = vmatmul.mubr.f32.gmra.mxu0 %v512
    %v1259 = vpop.f32.mrf.mxu0
    %v1260 = vadd.f32 %v457, %v1259
    %v1261 = vpop.f32.mrf.mxu0
    %1262 = vmatprep.mubr.f32.mxu0 0.0
    %1263 = vmatmul.mubr.f32.gmra.mxu0 %v515
    %v1264 = vpop.f32.mrf.mxu0
    %v1265 = vadd.f32 %v462, %v1264
    %v1266 = vpop.f32.mrf.mxu0
    %1267 = vmatprep.mubr.f32.mxu0 0.0
    %1268 = vmatmul.mubr.f32.gmra.mxu0 %v518
    %v1269 = vpop.f32.mrf.mxu0
    %v1270 = vadd.f32 %v467, %v1269
    %v1271 = vpop.f32.mrf.mxu0
    %1272 = vmatprep.mubr.f32.mxu0 0.0
    %1273 = vmatmul.mubr.f32.gmra.mxu0 %v521
    %v1274 = vpop.f32.mrf.mxu0
    %v1275 = vadd.f32 %v472, %v1274
    %v1276 = vpop.f32.mrf.mxu0
    %1277 = vmatprep.mubr.f32.mxu0 0.0
    %1278 = vmatmul.mubr.f32.gmra.mxu0 %v524
    %v1279 = vpop.f32.mrf.mxu0
    %v1280 = vadd.f32 %v477, %v1279
    %v1281 = vpop.f32.mrf.mxu0
    %1282 = vmatprep.mubr.f32.mxu0 0.0
    %1283 = vmatmul.mubr.f32.gmra.mxu0 %v527
    %v1284 = vpop.f32.mrf.mxu0
    %v1285 = vadd.f32 %v482, %v1284
    %v1286 = vpop.f32.mrf.mxu0
    %1287 = vmatprep.mubr.f32.mxu0 0.0
    %1288 = vmatmul.mubr.f32.gmra.mxu0 %v530
    %v1289 = vpop.f32.mrf.mxu0
    %v1290 = vadd.f32 %v487, %v1289
    %v1291 = vpop.f32.mrf.mxu0
    %1292 = vmatprep.mubr.f32.mxu0 0.0
    %1293 = vmatmul.mubr.f32.gmra.mxu0 %v533
    %v1294 = vpop.f32.mrf.mxu0
    %v1295 = vadd.f32 %v492, %v1294
    %v1296 = vpop.f32.mrf.mxu0
    %1297 = vmatprep.mubr.f32.mxu0 0.0
    %1298 = vmatmul.mubr.f32.gmra.mxu0 %v536
    %v1299 = vpop.f32.mrf.mxu0
    %v1300 = vadd.f32 %v497, %v1299
    %v1301 = vpop.f32.mrf.mxu0
    %1302 = vmatprep.mubr.f32.mxu0 0.0
    %1303 = vmatmul.mubr.f32.gmra.mxu0 %v539
    %v1304 = vpop.f32.mrf.mxu0
    %v1305 = vadd.f32 %v502, %v1304
    %v1306 = vpop.f32.mrf.mxu0
    %1307 = vdwg.mxu0
    %v1308 = vadd.f32 %v384, %v1250
    %v1309 = vadd.f32 %v385, %v1255
    %v1310 = vadd.f32 %v386, %v1260
    %v1311 = vadd.f32 %v387, %v1265
    %v1312 = vxor.u32 %v1308, 2147483648
    %v1313 = vxor.u32 %v1309, 2147483648
    %v1314 = vxor.u32 %v1310, 2147483648
    %v1315 = vxor.u32 %v1311, 2147483648
    %v1316 = vmul.f32 %v1312, 1.442695
    %v1317 = vpow.pop %v1316
    %v1318 = vmul.f32 %v1313, 1.442695
    %v1319 = vpow.pop %v1318
    %v1320 = vmul.f32 %v1314, 1.442695
    %v1321 = vpow.pop %v1320
    %v1322 = vmul.f32 %v1315, 1.442695
    %v1323 = vpow.pop %v1322
    %v1324 = vadd.f32 %v1317, 1.0
    %v1325 = vadd.f32 %v1319, 1.0
    %v1326 = vadd.f32 %v1321, 1.0
    %v1327 = vadd.f32 %v1323, 1.0
    %v1328 = vrcp.pop %v1324
    %v1329 = vmul.f32 1.0, %v1328
    %v1330 = vrcp.pop %v1325
    %v1331 = vmul.f32 1.0, %v1330
    %v1332 = vrcp.pop %v1326
    %v1333 = vmul.f32 1.0, %v1332
    %v1334 = vrcp.pop %v1327
    %v1335 = vmul.f32 1.0, %v1334
    %v1336 = vadd.f32 %v388, %v1270
    %v1337 = vadd.f32 %v389, %v1275
    %v1338 = vadd.f32 %v390, %v1280
    %v1339 = vadd.f32 %v391, %v1285
    %v1340 = vxor.u32 %v1336, 2147483648
    %v1341 = vxor.u32 %v1337, 2147483648
    %v1342 = vxor.u32 %v1338, 2147483648
    %v1343 = vxor.u32 %v1339, 2147483648
    %v1344 = vmul.f32 %v1340, 1.442695
    %v1345 = vpow.pop %v1344
    %v1346 = vmul.f32 %v1341, 1.442695
    %v1347 = vpow.pop %v1346
    %v1348 = vmul.f32 %v1342, 1.442695
    %v1349 = vpow.pop %v1348
    %v1350 = vmul.f32 %v1343, 1.442695
    %v1351 = vpow.pop %v1350
    %v1352 = vadd.f32 %v1345, 1.0
    %v1353 = vadd.f32 %v1347, 1.0
    %v1354 = vadd.f32 %v1349, 1.0
    %v1355 = vadd.f32 %v1351, 1.0
    %v1356 = vrcp.pop %v1352
    %v1357 = vmul.f32 1.0, %v1356
    %v1358 = vrcp.pop %v1353
    %v1359 = vmul.f32 1.0, %v1358
    %v1360 = vrcp.pop %v1354
    %v1361 = vmul.f32 1.0, %v1360
    %v1362 = vrcp.pop %v1355
    %v1363 = vmul.f32 1.0, %v1362
    %v1364 = vmul.f32 %v1329, %v1290
    %v1365 = vmul.f32 %v1331, %v1295
    %v1366 = vmul.f32 %v1333, %v1300
    %v1367 = vmul.f32 %v1335, %v1305
    %v1368 = vadd.f32 %v392, %v1364
    %v1369 = vadd.f32 %v393, %v1365
    %v1370 = vadd.f32 %v394, %v1366
    %v1371 = vadd.f32 %v395, %v1367
    %v1372 = vtanh.pop %v1368
    %v1373 = vtanh.pop %v1369
    %v1374 = vtanh.pop %v1370
    %v1375 = vtanh.pop %v1371
    %v1376 = vsub.f32 1.0, %v1357
    %v1377 = vsub.f32 1.0, %v1359
    %v1378 = vsub.f32 1.0, %v1361
    %v1379 = vsub.f32 1.0, %v1363
    %v1380 = vmul.f32 %v1376, %v1372
    %v1381 = vmul.f32 %v1377, %v1373
    %v1382 = vmul.f32 %v1378, %v1374
    %v1383 = vmul.f32 %v1379, %v1375
    %v1384 = vmul.f32 %v1357, %v1174
    %v1385 = vmul.f32 %v1359, %v1175
    %v1386 = vmul.f32 %v1361, %v1176
    %v1387 = vmul.f32 %v1363, %v1177
    %v1388 = vadd.f32 %v1380, %v1384
    %v1389 = vadd.f32 %v1381, %v1385
    %v1390 = vadd.f32 %v1382, %v1386
    %v1391 = vadd.f32 %v1383, %v1387
    %s1392 = scalar_lea.vmem [#allocation2], 96
    %1393 = vst.msk [vmem:[%s1392] sm:$0xff] %vm750, %v1388
    %1394 = vst.msk [vmem:[%s1392 + $0x8] sm:$0xff] %vm750, %v1389
    %1395 = vst.msk [vmem:[%s1392 + $0x10] sm:$0xff] %vm750, %v1390
    %1396 = vst.msk [vmem:[%s1392 + $0x18] sm:$0xff] %vm750, %v1391
    %1397 = vmatprep.subr.mxu0 0.0
    %1398 = vmatpush1.msra.mxu0 0.0
    %1399 = vmatprep.subr.mxu0 0.0
    %1400 = vmatpush1.msra.mxu0 0.0
    %1401 = vmatprep.subr.mxu0 0.0
    %1402 = vmatpush1.msra.mxu0 0.0
    %1403 = vmatprep.subr.mxu0 0.0
    %1404 = vmatpush1.msra.mxu0 0.0
    %1405 = vmatprep.subr.mxu0 0.0
    %1406 = vmatpush1.msra.mxu0 0.0
    %1407 = vmatprep.subr.mxu0 0.0
    %1408 = vmatpush1.msra.mxu0 0.0
    %1409 = vmatprep.subr.mxu0 0.0
    %1410 = vmatpush1.msra.mxu0 0.0
    %1411 = vmatprep.subr.mxu0 0.0
    %1412 = vmatpush1.msra.mxu0 0.0
    %1413 = vmatprep.subr.mxu0 0.0
    %1414 = vmatpush1.msra.mxu0 0.0
    %1415 = vmatprep.subr.mxu0 0.0
    %1416 = vmatpush1.msra.mxu0 0.0
    %1417 = vmatprep.subr.mxu0 0.0
    %1418 = vmatpush1.msra.mxu0 0.0
    %1419 = vmatprep.subr.mxu0 0.0
    %1420 = vmatpush1.msra.mxu0 0.0
    %1421 = vmatprep.subr.mxu0 0.0
    %1422 = vmatpush1.msra.mxu0 %v1391
    %1423 = vmatprep.subr.mxu0 0.0
    %1424 = vmatpush1.msra.mxu0 %v1390
    %1425 = vmatprep.subr.mxu0 0.0
    %1426 = vmatpush1.msra.mxu0 %v1389
    %1427 = vmatprep.subr.mxu0 0.0
    %1428 = vmatpush1.msra.mxu0 %v1388
    %1429 = vmatprep.subr.mxu0 0.0
    %1430 = vmatpush2.msra.mxu0 0.0
    %1431 = vmatprep.subr.mxu0 0.0
    %1432 = vmatpush2.msra.mxu0 0.0
    %1433 = vmatprep.subr.mxu0 0.0
    %1434 = vmatpush2.msra.mxu0 0.0
    %1435 = vmatprep.subr.mxu0 0.0
    %1436 = vmatpush2.msra.mxu0 0.0
    %1437 = vmatprep.subr.mxu0 0.0
    %1438 = vmatpush2.msra.mxu0 0.0
    %1439 = vmatprep.subr.mxu0 0.0
    %1440 = vmatpush2.msra.mxu0 0.0
    %1441 = vmatprep.subr.mxu0 0.0
    %1442 = vmatpush2.msra.mxu0 0.0
    %1443 = vmatprep.subr.mxu0 0.0
    %1444 = vmatpush2.msra.mxu0 0.0
    %1445 = vmatprep.subr.mxu0 0.0
    %1446 = vmatpush2.msra.mxu0 0.0
    %1447 = vmatprep.subr.mxu0 0.0
    %1448 = vmatpush2.msra.mxu0 0.0
    %1449 = vmatprep.subr.mxu0 0.0
    %1450 = vmatpush2.msra.mxu0 0.0
    %1451 = vmatprep.subr.mxu0 0.0
    %1452 = vmatpush2.msra.mxu0 0.0
    %1453 = vmatprep.subr.mxu0 0.0
    %1454 = vmatpush2.msra.mxu0 0.0
    %1455 = vmatprep.subr.mxu0 0.0
    %1456 = vmatpush2.msra.mxu0 0.0
    %1457 = vmatprep.subr.mxu0 0.0
    %1458 = vmatpush2.msra.mxu0 0.0
    %1459 = vmatprep.subr.mxu0 0.0
    %1460 = vmatpush2.msra.mxu0 0.0
    %1461 = vmatprep.mubr.f32.mxu0 0.0
    %1462 = vmatmul.mubr.f32.gmra.mxu0 %v506
    %v1463 = vpop.f32.mrf.mxu0
    %v1464 = vadd.f32 %v447, %v1463
    %v1465 = vpop.f32.mrf.mxu0
    %1466 = vmatprep.mubr.f32.mxu0 0.0
    %1467 = vmatmul.mubr.f32.gmra.mxu0 %v509
    %v1468 = vpop.f32.mrf.mxu0
    %v1469 = vadd.f32 %v452, %v1468
    %v1470 = vpop.f32.mrf.mxu0
    %1471 = vmatprep.mubr.f32.mxu0 0.0
    %1472 = vmatmul.mubr.f32.gmra.mxu0 %v512
    %v1473 = vpop.f32.mrf.mxu0
    %v1474 = vadd.f32 %v457, %v1473
    %v1475 = vpop.f32.mrf.mxu0
    %1476 = vmatprep.mubr.f32.mxu0 0.0
    %1477 = vmatmul.mubr.f32.gmra.mxu0 %v515
    %v1478 = vpop.f32.mrf.mxu0
    %v1479 = vadd.f32 %v462, %v1478
    %v1480 = vpop.f32.mrf.mxu0
    %1481 = vmatprep.mubr.f32.mxu0 0.0
    %1482 = vmatmul.mubr.f32.gmra.mxu0 %v518
    %v1483 = vpop.f32.mrf.mxu0
    %v1484 = vadd.f32 %v467, %v1483
    %v1485 = vpop.f32.mrf.mxu0
    %1486 = vmatprep.mubr.f32.mxu0 0.0
    %1487 = vmatmul.mubr.f32.gmra.mxu0 %v521
    %v1488 = vpop.f32.mrf.mxu0
    %v1489 = vadd.f32 %v472, %v1488
    %v1490 = vpop.f32.mrf.mxu0
    %1491 = vmatprep.mubr.f32.mxu0 0.0
    %1492 = vmatmul.mubr.f32.gmra.mxu0 %v524
    %v1493 = vpop.f32.mrf.mxu0
    %v1494 = vadd.f32 %v477, %v1493
    %v1495 = vpop.f32.mrf.mxu0
    %1496 = vmatprep.mubr.f32.mxu0 0.0
    %1497 = vmatmul.mubr.f32.gmra.mxu0 %v527
    %v1498 = vpop.f32.mrf.mxu0
    %v1499 = vadd.f32 %v482, %v1498
    %v1500 = vpop.f32.mrf.mxu0
    %1501 = vmatprep.mubr.f32.mxu0 0.0
    %1502 = vmatmul.mubr.f32.gmra.mxu0 %v530
    %v1503 = vpop.f32.mrf.mxu0
    %v1504 = vadd.f32 %v487, %v1503
    %v1505 = vpop.f32.mrf.mxu0
    %1506 = vmatprep.mubr.f32.mxu0 0.0
    %1507 = vmatmul.mubr.f32.gmra.mxu0 %v533
    %v1508 = vpop.f32.mrf.mxu0
    %v1509 = vadd.f32 %v492, %v1508
    %v1510 = vpop.f32.mrf.mxu0
    %1511 = vmatprep.mubr.f32.mxu0 0.0
    %1512 = vmatmul.mubr.f32.gmra.mxu0 %v536
    %v1513 = vpop.f32.mrf.mxu0
    %v1514 = vadd.f32 %v497, %v1513
    %v1515 = vpop.f32.mrf.mxu0
    %1516 = vmatprep.mubr.f32.mxu0 0.0
    %1517 = vmatmul.mubr.f32.gmra.mxu0 %v539
    %v1518 = vpop.f32.mrf.mxu0
    %v1519 = vadd.f32 %v502, %v1518
    %v1520 = vpop.f32.mrf.mxu0
    %1521 = vdwg.mxu0
    %v1522 = vadd.f32 %v396, %v1464
    %v1523 = vadd.f32 %v397, %v1469
    %v1524 = vadd.f32 %v398, %v1474
    %v1525 = vadd.f32 %v399, %v1479
    %v1526 = vxor.u32 %v1522, 2147483648
    %v1527 = vxor.u32 %v1523, 2147483648
    %v1528 = vxor.u32 %v1524, 2147483648
    %v1529 = vxor.u32 %v1525, 2147483648
    %v1530 = vmul.f32 %v1526, 1.442695
    %v1531 = vpow.pop %v1530
    %v1532 = vmul.f32 %v1527, 1.442695
    %v1533 = vpow.pop %v1532
    %v1534 = vmul.f32 %v1528, 1.442695
    %v1535 = vpow.pop %v1534
    %v1536 = vmul.f32 %v1529, 1.442695
    %v1537 = vpow.pop %v1536
    %v1538 = vadd.f32 %v1531, 1.0
    %v1539 = vadd.f32 %v1533, 1.0
    %v1540 = vadd.f32 %v1535, 1.0
    %v1541 = vadd.f32 %v1537, 1.0
    %v1542 = vrcp.pop %v1538
    %v1543 = vmul.f32 1.0, %v1542
    %v1544 = vrcp.pop %v1539
    %v1545 = vmul.f32 1.0, %v1544
    %v1546 = vrcp.pop %v1540
    %v1547 = vmul.f32 1.0, %v1546
    %v1548 = vrcp.pop %v1541
    %v1549 = vmul.f32 1.0, %v1548
    %v1550 = vadd.f32 %v400, %v1484
    %v1551 = vadd.f32 %v401, %v1489
    %v1552 = vadd.f32 %v402, %v1494
    %v1553 = vadd.f32 %v403, %v1499
    %v1554 = vxor.u32 %v1550, 2147483648
    %v1555 = vxor.u32 %v1551, 2147483648
    %v1556 = vxor.u32 %v1552, 2147483648
    %v1557 = vxor.u32 %v1553, 2147483648
    %v1558 = vmul.f32 %v1554, 1.442695
    %v1559 = vpow.pop %v1558
    %v1560 = vmul.f32 %v1555, 1.442695
    %v1561 = vpow.pop %v1560
    %v1562 = vmul.f32 %v1556, 1.442695
    %v1563 = vpow.pop %v1562
    %v1564 = vmul.f32 %v1557, 1.442695
    %v1565 = vpow.pop %v1564
    %v1566 = vadd.f32 %v1559, 1.0
    %v1567 = vadd.f32 %v1561, 1.0
    %v1568 = vadd.f32 %v1563, 1.0
    %v1569 = vadd.f32 %v1565, 1.0
    %v1570 = vrcp.pop %v1566
    %v1571 = vmul.f32 1.0, %v1570
    %v1572 = vrcp.pop %v1567
    %v1573 = vmul.f32 1.0, %v1572
    %v1574 = vrcp.pop %v1568
    %v1575 = vmul.f32 1.0, %v1574
    %v1576 = vrcp.pop %v1569
    %v1577 = vmul.f32 1.0, %v1576
    %v1578 = vmul.f32 %v1543, %v1504
    %v1579 = vmul.f32 %v1545, %v1509
    %v1580 = vmul.f32 %v1547, %v1514
    %v1581 = vmul.f32 %v1549, %v1519
    %v1582 = vadd.f32 %v404, %v1578
    %v1583 = vadd.f32 %v405, %v1579
    %v1584 = vadd.f32 %v406, %v1580
    %v1585 = vadd.f32 %v407, %v1581
    %v1586 = vtanh.pop %v1582
    %v1587 = vtanh.pop %v1583
    %v1588 = vtanh.pop %v1584
    %v1589 = vtanh.pop %v1585
    %v1590 = vsub.f32 1.0, %v1571
    %v1591 = vsub.f32 1.0, %v1573
    %v1592 = vsub.f32 1.0, %v1575
    %v1593 = vsub.f32 1.0, %v1577
    %v1594 = vmul.f32 %v1590, %v1586
    %v1595 = vmul.f32 %v1591, %v1587
    %v1596 = vmul.f32 %v1592, %v1588
    %v1597 = vmul.f32 %v1593, %v1589
    %v1598 = vmul.f32 %v1571, %v1388
    %v1599 = vmul.f32 %v1573, %v1389
    %v1600 = vmul.f32 %v1575, %v1390
    %v1601 = vmul.f32 %v1577, %v1391
    %v1602 = vadd.f32 %v1594, %v1598
    %v1603 = vadd.f32 %v1595, %v1599
    %v1604 = vadd.f32 %v1596, %v1600
    %v1605 = vadd.f32 %v1597, %v1601
    %s1606 = scalar_lea.vmem [#allocation2], 128
    %1607 = vst.msk [vmem:[%s1606] sm:$0xff] %vm750, %v1602
    %1608 = vst.msk [vmem:[%s1606 + $0x8] sm:$0xff] %vm750, %v1603
    %1609 = vst.msk [vmem:[%s1606 + $0x10] sm:$0xff] %vm750, %v1604
    %1610 = vst.msk [vmem:[%s1606 + $0x18] sm:$0xff] %vm750, %v1605
    %1611 = vmatprep.subr.mxu0 0.0
    %1612 = vmatpush1.msra.mxu0 0.0
    %1613 = vmatprep.subr.mxu0 0.0
    %1614 = vmatpush1.msra.mxu0 0.0
    %1615 = vmatprep.subr.mxu0 0.0
    %1616 = vmatpush1.msra.mxu0 0.0
    %1617 = vmatprep.subr.mxu0 0.0
    %1618 = vmatpush1.msra.mxu0 0.0
    %1619 = vmatprep.subr.mxu0 0.0
    %1620 = vmatpush1.msra.mxu0 0.0
    %1621 = vmatprep.subr.mxu0 0.0
    %1622 = vmatpush1.msra.mxu0 0.0
    %1623 = vmatprep.subr.mxu0 0.0
    %1624 = vmatpush1.msra.mxu0 0.0
    %1625 = vmatprep.subr.mxu0 0.0
    %1626 = vmatpush1.msra.mxu0 0.0
    %1627 = vmatprep.subr.mxu0 0.0
    %1628 = vmatpush1.msra.mxu0 0.0
    %1629 = vmatprep.subr.mxu0 0.0
    %1630 = vmatpush1.msra.mxu0 0.0
    %1631 = vmatprep.subr.mxu0 0.0
    %1632 = vmatpush1.msra.mxu0 0.0
    %1633 = vmatprep.subr.mxu0 0.0
    %1634 = vmatpush1.msra.mxu0 0.0
    %1635 = vmatprep.subr.mxu0 0.0
    %1636 = vmatpush1.msra.mxu0 %v1605
    %1637 = vmatprep.subr.mxu0 0.0
    %1638 = vmatpush1.msra.mxu0 %v1604
    %1639 = vmatprep.subr.mxu0 0.0
    %1640 = vmatpush1.msra.mxu0 %v1603
    %1641 = vmatprep.subr.mxu0 0.0
    %1642 = vmatpush1.msra.mxu0 %v1602
    %1643 = vmatprep.subr.mxu0 0.0
    %1644 = vmatpush2.msra.mxu0 0.0
    %1645 = vmatprep.subr.mxu0 0.0
    %1646 = vmatpush2.msra.mxu0 0.0
    %1647 = vmatprep.subr.mxu0 0.0
    %1648 = vmatpush2.msra.mxu0 0.0
    %1649 = vmatprep.subr.mxu0 0.0
    %1650 = vmatpush2.msra.mxu0 0.0
    %1651 = vmatprep.subr.mxu0 0.0
    %1652 = vmatpush2.msra.mxu0 0.0
    %1653 = vmatprep.subr.mxu0 0.0
    %1654 = vmatpush2.msra.mxu0 0.0
    %1655 = vmatprep.subr.mxu0 0.0
    %1656 = vmatpush2.msra.mxu0 0.0
    %1657 = vmatprep.subr.mxu0 0.0
    %1658 = vmatpush2.msra.mxu0 0.0
    %1659 = vmatprep.subr.mxu0 0.0
    %1660 = vmatpush2.msra.mxu0 0.0
    %1661 = vmatprep.subr.mxu0 0.0
    %1662 = vmatpush2.msra.mxu0 0.0
    %1663 = vmatprep.subr.mxu0 0.0
    %1664 = vmatpush2.msra.mxu0 0.0
    %1665 = vmatprep.subr.mxu0 0.0
    %1666 = vmatpush2.msra.mxu0 0.0
    %1667 = vmatprep.subr.mxu0 0.0
    %1668 = vmatpush2.msra.mxu0 0.0
    %1669 = vmatprep.subr.mxu0 0.0
    %1670 = vmatpush2.msra.mxu0 0.0
    %1671 = vmatprep.subr.mxu0 0.0
    %1672 = vmatpush2.msra.mxu0 0.0
    %1673 = vmatprep.subr.mxu0 0.0
    %1674 = vmatpush2.msra.mxu0 0.0
    %1675 = vmatprep.mubr.f32.mxu0 0.0
    %1676 = vmatmul.mubr.f32.gmra.mxu0 %v506
    %v1677 = vpop.f32.mrf.mxu0
    %v1678 = vadd.f32 %v447, %v1677
    %v1679 = vpop.f32.mrf.mxu0
    %1680 = vmatprep.mubr.f32.mxu0 0.0
    %1681 = vmatmul.mubr.f32.gmra.mxu0 %v509
    %v1682 = vpop.f32.mrf.mxu0
    %v1683 = vadd.f32 %v452, %v1682
    %v1684 = vpop.f32.mrf.mxu0
    %1685 = vmatprep.mubr.f32.mxu0 0.0
    %1686 = vmatmul.mubr.f32.gmra.mxu0 %v512
    %v1687 = vpop.f32.mrf.mxu0
    %v1688 = vadd.f32 %v457, %v1687
    %v1689 = vpop.f32.mrf.mxu0
    %1690 = vmatprep.mubr.f32.mxu0 0.0
    %1691 = vmatmul.mubr.f32.gmra.mxu0 %v515
    %v1692 = vpop.f32.mrf.mxu0
    %v1693 = vadd.f32 %v462, %v1692
    %v1694 = vpop.f32.mrf.mxu0
    %1695 = vmatprep.mubr.f32.mxu0 0.0
    %1696 = vmatmul.mubr.f32.gmra.mxu0 %v518
    %v1697 = vpop.f32.mrf.mxu0
    %v1698 = vadd.f32 %v467, %v1697
    %v1699 = vpop.f32.mrf.mxu0
    %1700 = vmatprep.mubr.f32.mxu0 0.0
    %1701 = vmatmul.mubr.f32.gmra.mxu0 %v521
    %v1702 = vpop.f32.mrf.mxu0
    %v1703 = vadd.f32 %v472, %v1702
    %v1704 = vpop.f32.mrf.mxu0
    %1705 = vmatprep.mubr.f32.mxu0 0.0
    %1706 = vmatmul.mubr.f32.gmra.mxu0 %v524
    %v1707 = vpop.f32.mrf.mxu0
    %v1708 = vadd.f32 %v477, %v1707
    %v1709 = vpop.f32.mrf.mxu0
    %1710 = vmatprep.mubr.f32.mxu0 0.0
    %1711 = vmatmul.mubr.f32.gmra.mxu0 %v527
    %v1712 = vpop.f32.mrf.mxu0
    %v1713 = vadd.f32 %v482, %v1712
    %v1714 = vpop.f32.mrf.mxu0
    %1715 = vmatprep.mubr.f32.mxu0 0.0
    %1716 = vmatmul.mubr.f32.gmra.mxu0 %v530
    %v1717 = vpop.f32.mrf.mxu0
    %v1718 = vadd.f32 %v487, %v1717
    %v1719 = vpop.f32.mrf.mxu0
    %1720 = vmatprep.mubr.f32.mxu0 0.0
    %1721 = vmatmul.mubr.f32.gmra.mxu0 %v533
    %v1722 = vpop.f32.mrf.mxu0
    %v1723 = vadd.f32 %v492, %v1722
    %v1724 = vpop.f32.mrf.mxu0
    %1725 = vmatprep.mubr.f32.mxu0 0.0
    %1726 = vmatmul.mubr.f32.gmra.mxu0 %v536
    %v1727 = vpop.f32.mrf.mxu0
    %v1728 = vadd.f32 %v497, %v1727
    %v1729 = vpop.f32.mrf.mxu0
    %1730 = vmatprep.mubr.f32.mxu0 0.0
    %1731 = vmatmul.mubr.f32.gmra.mxu0 %v539
    %v1732 = vpop.f32.mrf.mxu0
    %v1733 = vadd.f32 %v502, %v1732
    %v1734 = vpop.f32.mrf.mxu0
    %1735 = vdwg.mxu0
    %v1736 = vadd.f32 %v408, %v1678
    %v1737 = vadd.f32 %v409, %v1683
    %v1738 = vadd.f32 %v410, %v1688
    %v1739 = vadd.f32 %v411, %v1693
    %v1740 = vxor.u32 %v1736, 2147483648
    %v1741 = vxor.u32 %v1737, 2147483648
    %v1742 = vxor.u32 %v1738, 2147483648
    %v1743 = vxor.u32 %v1739, 2147483648
    %v1744 = vmul.f32 %v1740, 1.442695
    %v1745 = vpow.pop %v1744
    %v1746 = vmul.f32 %v1741, 1.442695
    %v1747 = vpow.pop %v1746
    %v1748 = vmul.f32 %v1742, 1.442695
    %v1749 = vpow.pop %v1748
    %v1750 = vmul.f32 %v1743, 1.442695
    %v1751 = vpow.pop %v1750
    %v1752 = vadd.f32 %v1745, 1.0
    %v1753 = vadd.f32 %v1747, 1.0
    %v1754 = vadd.f32 %v1749, 1.0
    %v1755 = vadd.f32 %v1751, 1.0
    %v1756 = vrcp.pop %v1752
    %v1757 = vmul.f32 1.0, %v1756
    %v1758 = vrcp.pop %v1753
    %v1759 = vmul.f32 1.0, %v1758
    %v1760 = vrcp.pop %v1754
    %v1761 = vmul.f32 1.0, %v1760
    %v1762 = vrcp.pop %v1755
    %v1763 = vmul.f32 1.0, %v1762
    %v1764 = vadd.f32 %v412, %v1698
    %v1765 = vadd.f32 %v413, %v1703
    %v1766 = vadd.f32 %v414, %v1708
    %v1767 = vadd.f32 %v415, %v1713
    %v1768 = vxor.u32 %v1764, 2147483648
    %v1769 = vxor.u32 %v1765, 2147483648
    %v1770 = vxor.u32 %v1766, 2147483648
    %v1771 = vxor.u32 %v1767, 2147483648
    %v1772 = vmul.f32 %v1768, 1.442695
    %v1773 = vpow.pop %v1772
    %v1774 = vmul.f32 %v1769, 1.442695
    %v1775 = vpow.pop %v1774
    %v1776 = vmul.f32 %v1770, 1.442695
    %v1777 = vpow.pop %v1776
    %v1778 = vmul.f32 %v1771, 1.442695
    %v1779 = vpow.pop %v1778
    %v1780 = vadd.f32 %v1773, 1.0
    %v1781 = vadd.f32 %v1775, 1.0
    %v1782 = vadd.f32 %v1777, 1.0
    %v1783 = vadd.f32 %v1779, 1.0
    %v1784 = vrcp.pop %v1780
    %v1785 = vmul.f32 1.0, %v1784
    %v1786 = vrcp.pop %v1781
    %v1787 = vmul.f32 1.0, %v1786
    %v1788 = vrcp.pop %v1782
    %v1789 = vmul.f32 1.0, %v1788
    %v1790 = vrcp.pop %v1783
    %v1791 = vmul.f32 1.0, %v1790
    %v1792 = vmul.f32 %v1757, %v1718
    %v1793 = vmul.f32 %v1759, %v1723
    %v1794 = vmul.f32 %v1761, %v1728
    %v1795 = vmul.f32 %v1763, %v1733
    %v1796 = vadd.f32 %v416, %v1792
    %v1797 = vadd.f32 %v417, %v1793
    %v1798 = vadd.f32 %v418, %v1794
    %v1799 = vadd.f32 %v419, %v1795
    %v1800 = vtanh.pop %v1796
    %v1801 = vtanh.pop %v1797
    %v1802 = vtanh.pop %v1798
    %v1803 = vtanh.pop %v1799
    %v1804 = vsub.f32 1.0, %v1785
    %v1805 = vsub.f32 1.0, %v1787
    %v1806 = vsub.f32 1.0, %v1789
    %v1807 = vsub.f32 1.0, %v1791
    %v1808 = vmul.f32 %v1804, %v1800
    %v1809 = vmul.f32 %v1805, %v1801
    %v1810 = vmul.f32 %v1806, %v1802
    %v1811 = vmul.f32 %v1807, %v1803
    %v1812 = vmul.f32 %v1785, %v1602
    %v1813 = vmul.f32 %v1787, %v1603
    %v1814 = vmul.f32 %v1789, %v1604
    %v1815 = vmul.f32 %v1791, %v1605
    %v1816 = vadd.f32 %v1808, %v1812
    %v1817 = vadd.f32 %v1809, %v1813
    %v1818 = vadd.f32 %v1810, %v1814
    %v1819 = vadd.f32 %v1811, %v1815
    %s1820 = scalar_lea.vmem [#allocation2], 160
    %1821 = vst.msk [vmem:[%s1820] sm:$0xff] %vm750, %v1816
    %1822 = vst.msk [vmem:[%s1820 + $0x8] sm:$0xff] %vm750, %v1817
    %1823 = vst.msk [vmem:[%s1820 + $0x10] sm:$0xff] %vm750, %v1818
    %1824 = vst.msk [vmem:[%s1820 + $0x18] sm:$0xff] %vm750, %v1819
    %1825 = vmatprep.subr.mxu0 0.0
    %1826 = vmatpush1.msra.mxu0 0.0
    %1827 = vmatprep.subr.mxu0 0.0
    %1828 = vmatpush1.msra.mxu0 0.0
    %1829 = vmatprep.subr.mxu0 0.0
    %1830 = vmatpush1.msra.mxu0 0.0
    %1831 = vmatprep.subr.mxu0 0.0
    %1832 = vmatpush1.msra.mxu0 0.0
    %1833 = vmatprep.subr.mxu0 0.0
    %1834 = vmatpush1.msra.mxu0 0.0
    %1835 = vmatprep.subr.mxu0 0.0
    %1836 = vmatpush1.msra.mxu0 0.0
    %1837 = vmatprep.subr.mxu0 0.0
    %1838 = vmatpush1.msra.mxu0 0.0
    %1839 = vmatprep.subr.mxu0 0.0
    %1840 = vmatpush1.msra.mxu0 0.0
    %1841 = vmatprep.subr.mxu0 0.0
    %1842 = vmatpush1.msra.mxu0 0.0
    %1843 = vmatprep.subr.mxu0 0.0
    %1844 = vmatpush1.msra.mxu0 0.0
    %1845 = vmatprep.subr.mxu0 0.0
    %1846 = vmatpush1.msra.mxu0 0.0
    %1847 = vmatprep.subr.mxu0 0.0
    %1848 = vmatpush1.msra.mxu0 0.0
    %1849 = vmatprep.subr.mxu0 0.0
    %1850 = vmatpush1.msra.mxu0 %v1819
    %1851 = vmatprep.subr.mxu0 0.0
    %1852 = vmatpush1.msra.mxu0 %v1818
    %1853 = vmatprep.subr.mxu0 0.0
    %1854 = vmatpush1.msra.mxu0 %v1817
    %1855 = vmatprep.subr.mxu0 0.0
    %1856 = vmatpush1.msra.mxu0 %v1816
    %1857 = vmatprep.subr.mxu0 0.0
    %1858 = vmatpush2.msra.mxu0 0.0
    %1859 = vmatprep.subr.mxu0 0.0
    %1860 = vmatpush2.msra.mxu0 0.0
    %1861 = vmatprep.subr.mxu0 0.0
    %1862 = vmatpush2.msra.mxu0 0.0
    %1863 = vmatprep.subr.mxu0 0.0
    %1864 = vmatpush2.msra.mxu0 0.0
    %1865 = vmatprep.subr.mxu0 0.0
    %1866 = vmatpush2.msra.mxu0 0.0
    %1867 = vmatprep.subr.mxu0 0.0
    %1868 = vmatpush2.msra.mxu0 0.0
    %1869 = vmatprep.subr.mxu0 0.0
    %1870 = vmatpush2.msra.mxu0 0.0
    %1871 = vmatprep.subr.mxu0 0.0
    %1872 = vmatpush2.msra.mxu0 0.0
    %1873 = vmatprep.subr.mxu0 0.0
    %1874 = vmatpush2.msra.mxu0 0.0
    %1875 = vmatprep.subr.mxu0 0.0
    %1876 = vmatpush2.msra.mxu0 0.0
    %1877 = vmatprep.subr.mxu0 0.0
    %1878 = vmatpush2.msra.mxu0 0.0
    %1879 = vmatprep.subr.mxu0 0.0
    %1880 = vmatpush2.msra.mxu0 0.0
    %1881 = vmatprep.subr.mxu0 0.0
    %1882 = vmatpush2.msra.mxu0 0.0
    %1883 = vmatprep.subr.mxu0 0.0
    %1884 = vmatpush2.msra.mxu0 0.0
    %1885 = vmatprep.subr.mxu0 0.0
    %1886 = vmatpush2.msra.mxu0 0.0
    %1887 = vmatprep.subr.mxu0 0.0
    %1888 = vmatpush2.msra.mxu0 0.0
    %1889 = vmatprep.mubr.f32.mxu0 0.0
    %1890 = vmatmul.mubr.f32.gmra.mxu0 %v506
    %v1891 = vpop.f32.mrf.mxu0
    %v1892 = vadd.f32 %v447, %v1891
    %v1893 = vpop.f32.mrf.mxu0
    %1894 = vmatprep.mubr.f32.mxu0 0.0
    %1895 = vmatmul.mubr.f32.gmra.mxu0 %v509
    %v1896 = vpop.f32.mrf.mxu0
    %v1897 = vadd.f32 %v452, %v1896
    %v1898 = vpop.f32.mrf.mxu0
    %1899 = vmatprep.mubr.f32.mxu0 0.0
    %1900 = vmatmul.mubr.f32.gmra.mxu0 %v512
    %v1901 = vpop.f32.mrf.mxu0
    %v1902 = vadd.f32 %v457, %v1901
    %v1903 = vpop.f32.mrf.mxu0
    %1904 = vmatprep.mubr.f32.mxu0 0.0
    %1905 = vmatmul.mubr.f32.gmra.mxu0 %v515
    %v1906 = vpop.f32.mrf.mxu0
    %v1907 = vadd.f32 %v462, %v1906
    %v1908 = vpop.f32.mrf.mxu0
    %1909 = vmatprep.mubr.f32.mxu0 0.0
    %1910 = vmatmul.mubr.f32.gmra.mxu0 %v518
    %v1911 = vpop.f32.mrf.mxu0
    %v1912 = vadd.f32 %v467, %v1911
    %v1913 = vpop.f32.mrf.mxu0
    %1914 = vmatprep.mubr.f32.mxu0 0.0
    %1915 = vmatmul.mubr.f32.gmra.mxu0 %v521
    %v1916 = vpop.f32.mrf.mxu0
    %v1917 = vadd.f32 %v472, %v1916
    %v1918 = vpop.f32.mrf.mxu0
    %1919 = vmatprep.mubr.f32.mxu0 0.0
    %1920 = vmatmul.mubr.f32.gmra.mxu0 %v524
    %v1921 = vpop.f32.mrf.mxu0
    %v1922 = vadd.f32 %v477, %v1921
    %v1923 = vpop.f32.mrf.mxu0
    %1924 = vmatprep.mubr.f32.mxu0 0.0
    %1925 = vmatmul.mubr.f32.gmra.mxu0 %v527
    %v1926 = vpop.f32.mrf.mxu0
    %v1927 = vadd.f32 %v482, %v1926
    %v1928 = vpop.f32.mrf.mxu0
    %1929 = vmatprep.mubr.f32.mxu0 0.0
    %1930 = vmatmul.mubr.f32.gmra.mxu0 %v530
    %v1931 = vpop.f32.mrf.mxu0
    %v1932 = vadd.f32 %v487, %v1931
    %v1933 = vpop.f32.mrf.mxu0
    %1934 = vmatprep.mubr.f32.mxu0 0.0
    %1935 = vmatmul.mubr.f32.gmra.mxu0 %v533
    %v1936 = vpop.f32.mrf.mxu0
    %v1937 = vadd.f32 %v492, %v1936
    %v1938 = vpop.f32.mrf.mxu0
    %1939 = vmatprep.mubr.f32.mxu0 0.0
    %1940 = vmatmul.mubr.f32.gmra.mxu0 %v536
    %v1941 = vpop.f32.mrf.mxu0
    %v1942 = vadd.f32 %v497, %v1941
    %v1943 = vpop.f32.mrf.mxu0
    %1944 = vmatprep.mubr.f32.mxu0 0.0
    %1945 = vmatmul.mubr.f32.gmra.mxu0 %v539
    %v1946 = vpop.f32.mrf.mxu0
    %v1947 = vadd.f32 %v502, %v1946
    %v1948 = vpop.f32.mrf.mxu0
    %1949 = vdwg.mxu0
    %v1950 = vadd.f32 %v420, %v1892
    %v1951 = vadd.f32 %v421, %v1897
    %v1952 = vadd.f32 %v422, %v1902
    %v1953 = vadd.f32 %v423, %v1907
    %v1954 = vxor.u32 %v1950, 2147483648
    %v1955 = vxor.u32 %v1951, 2147483648
    %v1956 = vxor.u32 %v1952, 2147483648
    %v1957 = vxor.u32 %v1953, 2147483648
    %v1958 = vmul.f32 %v1954, 1.442695
    %v1959 = vpow.pop %v1958
    %v1960 = vmul.f32 %v1955, 1.442695
    %v1961 = vpow.pop %v1960
    %v1962 = vmul.f32 %v1956, 1.442695
    %v1963 = vpow.pop %v1962
    %v1964 = vmul.f32 %v1957, 1.442695
    %v1965 = vpow.pop %v1964
    %v1966 = vadd.f32 %v1959, 1.0
    %v1967 = vadd.f32 %v1961, 1.0
    %v1968 = vadd.f32 %v1963, 1.0
    %v1969 = vadd.f32 %v1965, 1.0
    %v1970 = vrcp.pop %v1966
    %v1971 = vmul.f32 1.0, %v1970
    %v1972 = vrcp.pop %v1967
    %v1973 = vmul.f32 1.0, %v1972
    %v1974 = vrcp.pop %v1968
    %v1975 = vmul.f32 1.0, %v1974
    %v1976 = vrcp.pop %v1969
    %v1977 = vmul.f32 1.0, %v1976
    %v1978 = vadd.f32 %v424, %v1912
    %v1979 = vadd.f32 %v425, %v1917
    %v1980 = vadd.f32 %v426, %v1922
    %v1981 = vadd.f32 %v427, %v1927
    %v1982 = vxor.u32 %v1978, 2147483648
    %v1983 = vxor.u32 %v1979, 2147483648
    %v1984 = vxor.u32 %v1980, 2147483648
    %v1985 = vxor.u32 %v1981, 2147483648
    %v1986 = vmul.f32 %v1982, 1.442695
    %v1987 = vpow.pop %v1986
    %v1988 = vmul.f32 %v1983, 1.442695
    %v1989 = vpow.pop %v1988
    %v1990 = vmul.f32 %v1984, 1.442695
    %v1991 = vpow.pop %v1990
    %v1992 = vmul.f32 %v1985, 1.442695
    %v1993 = vpow.pop %v1992
    %v1994 = vadd.f32 %v1987, 1.0
    %v1995 = vadd.f32 %v1989, 1.0
    %v1996 = vadd.f32 %v1991, 1.0
    %v1997 = vadd.f32 %v1993, 1.0
    %v1998 = vrcp.pop %v1994
    %v1999 = vmul.f32 1.0, %v1998
    %v2000 = vrcp.pop %v1995
    %v2001 = vmul.f32 1.0, %v2000
    %v2002 = vrcp.pop %v1996
    %v2003 = vmul.f32 1.0, %v2002
    %v2004 = vrcp.pop %v1997
    %v2005 = vmul.f32 1.0, %v2004
    %v2006 = vmul.f32 %v1971, %v1932
    %v2007 = vmul.f32 %v1973, %v1937
    %v2008 = vmul.f32 %v1975, %v1942
    %v2009 = vmul.f32 %v1977, %v1947
    %v2010 = vadd.f32 %v428, %v2006
    %v2011 = vadd.f32 %v429, %v2007
    %v2012 = vadd.f32 %v430, %v2008
    %v2013 = vadd.f32 %v431, %v2009
    %v2014 = vtanh.pop %v2010
    %v2015 = vtanh.pop %v2011
    %v2016 = vtanh.pop %v2012
    %v2017 = vtanh.pop %v2013
    %v2018 = vsub.f32 1.0, %v1999
    %v2019 = vsub.f32 1.0, %v2001
    %v2020 = vsub.f32 1.0, %v2003
    %v2021 = vsub.f32 1.0, %v2005
    %v2022 = vmul.f32 %v2018, %v2014
    %v2023 = vmul.f32 %v2019, %v2015
    %v2024 = vmul.f32 %v2020, %v2016
    %v2025 = vmul.f32 %v2021, %v2017
    %v2026 = vmul.f32 %v1999, %v1816
    %v2027 = vmul.f32 %v2001, %v1817
    %v2028 = vmul.f32 %v2003, %v1818
    %v2029 = vmul.f32 %v2005, %v1819
    %v2030 = vadd.f32 %v2022, %v2026
    %v2031 = vadd.f32 %v2023, %v2027
    %v2032 = vadd.f32 %v2024, %v2028
    %v2033 = vadd.f32 %v2025, %v2029
    %s2034 = scalar_lea.vmem [#allocation2], 192
    %2035 = vst.msk [vmem:[%s2034] sm:$0xff] %vm750, %v2030
    %2036 = vst.msk [vmem:[%s2034 + $0x8] sm:$0xff] %vm750, %v2031
    %2037 = vst.msk [vmem:[%s2034 + $0x10] sm:$0xff] %vm750, %v2032
    %2038 = vst.msk [vmem:[%s2034 + $0x18] sm:$0xff] %vm750, %v2033
    %2039 = vmatprep.subr.mxu0 0.0
    %2040 = vmatpush1.msra.mxu0 0.0
    %2041 = vmatprep.subr.mxu0 0.0
    %2042 = vmatpush1.msra.mxu0 0.0
    %2043 = vmatprep.subr.mxu0 0.0
    %2044 = vmatpush1.msra.mxu0 0.0
    %2045 = vmatprep.subr.mxu0 0.0
    %2046 = vmatpush1.msra.mxu0 0.0
    %2047 = vmatprep.subr.mxu0 0.0
    %2048 = vmatpush1.msra.mxu0 0.0
    %2049 = vmatprep.subr.mxu0 0.0
    %2050 = vmatpush1.msra.mxu0 0.0
    %2051 = vmatprep.subr.mxu0 0.0
    %2052 = vmatpush1.msra.mxu0 0.0
    %2053 = vmatprep.subr.mxu0 0.0
    %2054 = vmatpush1.msra.mxu0 0.0
    %2055 = vmatprep.subr.mxu0 0.0
    %2056 = vmatpush1.msra.mxu0 0.0
    %2057 = vmatprep.subr.mxu0 0.0
    %2058 = vmatpush1.msra.mxu0 0.0
    %2059 = vmatprep.subr.mxu0 0.0
    %2060 = vmatpush1.msra.mxu0 0.0
    %2061 = vmatprep.subr.mxu0 0.0
    %2062 = vmatpush1.msra.mxu0 0.0
    %2063 = vmatprep.subr.mxu0 0.0
    %2064 = vmatpush1.msra.mxu0 %v2033
    %2065 = vmatprep.subr.mxu0 0.0
    %2066 = vmatpush1.msra.mxu0 %v2032
    %2067 = vmatprep.subr.mxu0 0.0
    %2068 = vmatpush1.msra.mxu0 %v2031
    %2069 = vmatprep.subr.mxu0 0.0
    %2070 = vmatpush1.msra.mxu0 %v2030
    %2071 = vmatprep.subr.mxu0 0.0
    %2072 = vmatpush2.msra.mxu0 0.0
    %2073 = vmatprep.subr.mxu0 0.0
    %2074 = vmatpush2.msra.mxu0 0.0
    %2075 = vmatprep.subr.mxu0 0.0
    %2076 = vmatpush2.msra.mxu0 0.0
    %2077 = vmatprep.subr.mxu0 0.0
    %2078 = vmatpush2.msra.mxu0 0.0
    %2079 = vmatprep.subr.mxu0 0.0
    %2080 = vmatpush2.msra.mxu0 0.0
    %2081 = vmatprep.subr.mxu0 0.0
    %2082 = vmatpush2.msra.mxu0 0.0
    %2083 = vmatprep.subr.mxu0 0.0
    %2084 = vmatpush2.msra.mxu0 0.0
    %2085 = vmatprep.subr.mxu0 0.0
    %2086 = vmatpush2.msra.mxu0 0.0
    %2087 = vmatprep.subr.mxu0 0.0
    %2088 = vmatpush2.msra.mxu0 0.0
    %2089 = vmatprep.subr.mxu0 0.0
    %2090 = vmatpush2.msra.mxu0 0.0
    %2091 = vmatprep.subr.mxu0 0.0
    %2092 = vmatpush2.msra.mxu0 0.0
    %2093 = vmatprep.subr.mxu0 0.0
    %2094 = vmatpush2.msra.mxu0 0.0
    %2095 = vmatprep.subr.mxu0 0.0
    %2096 = vmatpush2.msra.mxu0 0.0
    %2097 = vmatprep.subr.mxu0 0.0
    %2098 = vmatpush2.msra.mxu0 0.0
    %2099 = vmatprep.subr.mxu0 0.0
    %2100 = vmatpush2.msra.mxu0 0.0
    %2101 = vmatprep.subr.mxu0 0.0
    %2102 = vmatpush2.msra.mxu0 0.0
    %2103 = vmatprep.mubr.f32.mxu0 0.0
    %2104 = vmatmul.mubr.f32.gmra.mxu0 %v506
    %v2105 = vpop.f32.mrf.mxu0
    %v2106 = vadd.f32 %v447, %v2105
    %v2107 = vpop.f32.mrf.mxu0
    %2108 = vmatprep.mubr.f32.mxu0 0.0
    %2109 = vmatmul.mubr.f32.gmra.mxu0 %v509
    %v2110 = vpop.f32.mrf.mxu0
    %v2111 = vadd.f32 %v452, %v2110
    %v2112 = vpop.f32.mrf.mxu0
    %2113 = vmatprep.mubr.f32.mxu0 0.0
    %2114 = vmatmul.mubr.f32.gmra.mxu0 %v512
    %v2115 = vpop.f32.mrf.mxu0
    %v2116 = vadd.f32 %v457, %v2115
    %v2117 = vpop.f32.mrf.mxu0
    %2118 = vmatprep.mubr.f32.mxu0 0.0
    %2119 = vmatmul.mubr.f32.gmra.mxu0 %v515
    %v2120 = vpop.f32.mrf.mxu0
    %v2121 = vadd.f32 %v462, %v2120
    %v2122 = vpop.f32.mrf.mxu0
    %2123 = vmatprep.mubr.f32.mxu0 0.0
    %2124 = vmatmul.mubr.f32.gmra.mxu0 %v518
    %v2125 = vpop.f32.mrf.mxu0
    %v2126 = vadd.f32 %v467, %v2125
    %v2127 = vpop.f32.mrf.mxu0
    %2128 = vmatprep.mubr.f32.mxu0 0.0
    %2129 = vmatmul.mubr.f32.gmra.mxu0 %v521
    %v2130 = vpop.f32.mrf.mxu0
    %v2131 = vadd.f32 %v472, %v2130
    %v2132 = vpop.f32.mrf.mxu0
    %2133 = vmatprep.mubr.f32.mxu0 0.0
    %2134 = vmatmul.mubr.f32.gmra.mxu0 %v524
    %v2135 = vpop.f32.mrf.mxu0
    %v2136 = vadd.f32 %v477, %v2135
    %v2137 = vpop.f32.mrf.mxu0
    %2138 = vmatprep.mubr.f32.mxu0 0.0
    %2139 = vmatmul.mubr.f32.gmra.mxu0 %v527
    %v2140 = vpop.f32.mrf.mxu0
    %v2141 = vadd.f32 %v482, %v2140
    %v2142 = vpop.f32.mrf.mxu0
    %2143 = vmatprep.mubr.f32.mxu0 0.0
    %2144 = vmatmul.mubr.f32.gmra.mxu0 %v530
    %v2145 = vpop.f32.mrf.mxu0
    %v2146 = vadd.f32 %v487, %v2145
    %v2147 = vpop.f32.mrf.mxu0
    %2148 = vmatprep.mubr.f32.mxu0 0.0
    %2149 = vmatmul.mubr.f32.gmra.mxu0 %v533
    %v2150 = vpop.f32.mrf.mxu0
    %v2151 = vadd.f32 %v492, %v2150
    %v2152 = vpop.f32.mrf.mxu0
    %2153 = vmatprep.mubr.f32.mxu0 0.0
    %2154 = vmatmul.mubr.f32.gmra.mxu0 %v536
    %v2155 = vpop.f32.mrf.mxu0
    %v2156 = vadd.f32 %v497, %v2155
    %v2157 = vpop.f32.mrf.mxu0
    %2158 = vmatprep.mubr.f32.mxu0 0.0
    %2159 = vmatmul.mubr.f32.gmra.mxu0 %v539
    %v2160 = vpop.f32.mrf.mxu0
    %v2161 = vadd.f32 %v502, %v2160
    %v2162 = vpop.f32.mrf.mxu0
    %2163 = vdwg.mxu0
    %v2164 = vadd.f32 %v432, %v2106
    %v2165 = vadd.f32 %v433, %v2111
    %v2166 = vadd.f32 %v434, %v2116
    %v2167 = vadd.f32 %v435, %v2121
    %v2168 = vxor.u32 %v2164, 2147483648
    %v2169 = vxor.u32 %v2165, 2147483648
    %v2170 = vxor.u32 %v2166, 2147483648
    %v2171 = vxor.u32 %v2167, 2147483648
    %v2172 = vmul.f32 %v2168, 1.442695
    %v2173 = vpow.pop %v2172
    %v2174 = vmul.f32 %v2169, 1.442695
    %v2175 = vpow.pop %v2174
    %v2176 = vmul.f32 %v2170, 1.442695
    %v2177 = vpow.pop %v2176
    %v2178 = vmul.f32 %v2171, 1.442695
    %v2179 = vpow.pop %v2178
    %v2180 = vadd.f32 %v2173, 1.0
    %v2181 = vadd.f32 %v2175, 1.0
    %v2182 = vadd.f32 %v2177, 1.0
    %v2183 = vadd.f32 %v2179, 1.0
    %v2184 = vrcp.pop %v2180
    %v2185 = vmul.f32 1.0, %v2184
    %v2186 = vrcp.pop %v2181
    %v2187 = vmul.f32 1.0, %v2186
    %v2188 = vrcp.pop %v2182
    %v2189 = vmul.f32 1.0, %v2188
    %v2190 = vrcp.pop %v2183
    %v2191 = vmul.f32 1.0, %v2190
    %v2192 = vadd.f32 %v436, %v2126
    %v2193 = vadd.f32 %v437, %v2131
    %v2194 = vadd.f32 %v438, %v2136
    %v2195 = vadd.f32 %v439, %v2141
    %v2196 = vxor.u32 %v2192, 2147483648
    %v2197 = vxor.u32 %v2193, 2147483648
    %v2198 = vxor.u32 %v2194, 2147483648
    %v2199 = vxor.u32 %v2195, 2147483648
    %v2200 = vmul.f32 %v2196, 1.442695
    %v2201 = vpow.pop %v2200
    %v2202 = vmul.f32 %v2197, 1.442695
    %v2203 = vpow.pop %v2202
    %v2204 = vmul.f32 %v2198, 1.442695
    %v2205 = vpow.pop %v2204
    %v2206 = vmul.f32 %v2199, 1.442695
    %v2207 = vpow.pop %v2206
    %v2208 = vadd.f32 %v2201, 1.0
    %v2209 = vadd.f32 %v2203, 1.0
    %v2210 = vadd.f32 %v2205, 1.0
    %v2211 = vadd.f32 %v2207, 1.0
    %v2212 = vrcp.pop %v2208
    %v2213 = vmul.f32 1.0, %v2212
    %v2214 = vrcp.pop %v2209
    %v2215 = vmul.f32 1.0, %v2214
    %v2216 = vrcp.pop %v2210
    %v2217 = vmul.f32 1.0, %v2216
    %v2218 = vrcp.pop %v2211
    %v2219 = vmul.f32 1.0, %v2218
    %v2220 = vmul.f32 %v2185, %v2146
    %v2221 = vmul.f32 %v2187, %v2151
    %v2222 = vmul.f32 %v2189, %v2156
    %v2223 = vmul.f32 %v2191, %v2161
    %v2224 = vadd.f32 %v440, %v2220
    %v2225 = vadd.f32 %v441, %v2221
    %v2226 = vadd.f32 %v442, %v2222
    %v2227 = vadd.f32 %v443, %v2223
    %v2228 = vtanh.pop %v2224
    %v2229 = vtanh.pop %v2225
    %v2230 = vtanh.pop %v2226
    %v2231 = vtanh.pop %v2227
    %v2232 = vsub.f32 1.0, %v2213
    %v2233 = vsub.f32 1.0, %v2215
    %v2234 = vsub.f32 1.0, %v2217
    %v2235 = vsub.f32 1.0, %v2219
    %v2236 = vmul.f32 %v2232, %v2228
    %v2237 = vmul.f32 %v2233, %v2229
    %v2238 = vmul.f32 %v2234, %v2230
    %v2239 = vmul.f32 %v2235, %v2231
    %v2240 = vmul.f32 %v2213, %v2030
    %v2241 = vmul.f32 %v2215, %v2031
    %v2242 = vmul.f32 %v2217, %v2032
    %v2243 = vmul.f32 %v2219, %v2033
    %v2244 = vadd.f32 %v2236, %v2240
    %v2245 = vadd.f32 %v2237, %v2241
    %v2246 = vadd.f32 %v2238, %v2242
    %v2247 = vadd.f32 %v2239, %v2243
    %s2248 = scalar_lea.vmem [#allocation2], 224
    %2249 = vst.msk [vmem:[%s2248] sm:$0xff] %vm750, %v2244
    %2250 = vst.msk [vmem:[%s2248 + $0x8] sm:$0xff] %vm750, %v2245
    %2251 = vst.msk [vmem:[%s2248 + $0x10] sm:$0xff] %vm750, %v2246
    %2252 = vst.msk [vmem:[%s2248 + $0x18] sm:$0xff] %vm750, %v2247
    %v2253 = vld [vmem:[#allocation2] sm:$0xff]
    %v2254 = vld [vmem:[#allocation2 + $0x8] sm:$0xff]
    %v2255 = vld [vmem:[#allocation2 + $0x10] sm:$0xff]
    %v2256 = vld [vmem:[#allocation2 + $0x18] sm:$0xff]
    %v2257 = vld [vmem:[#allocation2 + $0x20] sm:$0xff]
    %v2258 = vld [vmem:[#allocation2 + $0x28] sm:$0xff]
    %v2259 = vld [vmem:[#allocation2 + $0x30] sm:$0xff]
    %v2260 = vld [vmem:[#allocation2 + $0x38] sm:$0xff]
    %v2261 = vld [vmem:[#allocation2 + $0x40] sm:$0xff]
    %v2262 = vld [vmem:[#allocation2 + $0x48] sm:$0xff]
    %v2263 = vld [vmem:[#allocation2 + $0x50] sm:$0xff]
    %v2264 = vld [vmem:[#allocation2 + $0x58] sm:$0xff]
    %v2265 = vld [vmem:[#allocation2 + $0x60] sm:$0xff]
    %v2266 = vld [vmem:[#allocation2 + $0x68] sm:$0xff]
    %v2267 = vld [vmem:[#allocation2 + $0x70] sm:$0xff]
    %v2268 = vld [vmem:[#allocation2 + $0x78] sm:$0xff]
    %v2269 = vld [vmem:[#allocation2 + $0x80] sm:$0xff]
    %v2270 = vld [vmem:[#allocation2 + $0x88] sm:$0xff]
    %v2271 = vld [vmem:[#allocation2 + $0x90] sm:$0xff]
    %v2272 = vld [vmem:[#allocation2 + $0x98] sm:$0xff]
    %v2273 = vld [vmem:[#allocation2 + $0xa0] sm:$0xff]
    %v2274 = vld [vmem:[#allocation2 + $0xa8] sm:$0xff]
    %v2275 = vld [vmem:[#allocation2 + $0xb0] sm:$0xff]
    %v2276 = vld [vmem:[#allocation2 + $0xb8] sm:$0xff]
    %v2277 = vld [vmem:[#allocation2 + $0xc0] sm:$0xff]
    %v2278 = vld [vmem:[#allocation2 + $0xc8] sm:$0xff]
    %v2279 = vld [vmem:[#allocation2 + $0xd0] sm:$0xff]
    %v2280 = vld [vmem:[#allocation2 + $0xd8] sm:$0xff]
    %v2281 = vld [vmem:[#allocation2 + $0xe0] sm:$0xff]
    %v2282 = vld [vmem:[#allocation2 + $0xe8] sm:$0xff]
    %v2283 = vld [vmem:[#allocation2 + $0xf0] sm:$0xff]
    %v2284 = vld [vmem:[#allocation2 + $0xf8] sm:$0xff]
    %v2285 = vld [vmem:[%s6] sm:$0xff]
    %v2286 = vld [vmem:[%s6 + $0x8] sm:$0xff]
    %v2287 = vld [vmem:[%s6 + $0x10] sm:$0xff]
    %v2288 = vld [vmem:[%s6 + $0x18] sm:$0xff]
    %2290 = vset.pattern.permute.xlu0 0
    %2291 = vperm.xlu0 %2290, %v2285
    %v2292 = vpop.permute.xlu0 %2291
    %2295 = vset.pattern.permute.xlu0 0
    %2296 = vperm.xlu0 %2295, %v2286
    %v2297 = vpop.permute.xlu0 %2296
    %2300 = vset.pattern.permute.xlu0 0
    %2301 = vperm.xlu0 %2300, %v2287
    %v2302 = vpop.permute.xlu0 %2301
    %2305 = vset.pattern.permute.xlu0 0
    %2306 = vperm.xlu0 %2305, %v2288
    %v2307 = vpop.permute.xlu0 %2306
    %v2309 = vmul.f32 %v2253, %v2292
    %v2310 = vmul.f32 %v2254, %v2297
    %v2311 = vmul.f32 %v2255, %v2302
    %v2312 = vmul.f32 %v2256, %v2307
    %v2313 = vmul.f32 %v2257, %v2292
    %v2314 = vmul.f32 %v2258, %v2297
    %v2315 = vmul.f32 %v2259, %v2302
    %v2316 = vmul.f32 %v2260, %v2307
    %v2317 = vmul.f32 %v2261, %v2292
    %v2318 = vmul.f32 %v2262, %v2297
    %v2319 = vmul.f32 %v2263, %v2302
    %v2320 = vmul.f32 %v2264, %v2307
    %v2321 = vmul.f32 %v2265, %v2292
    %v2322 = vmul.f32 %v2266, %v2297
    %v2323 = vmul.f32 %v2267, %v2302
    %v2324 = vmul.f32 %v2268, %v2307
    %v2325 = vmul.f32 %v2269, %v2292
    %v2326 = vmul.f32 %v2270, %v2297
    %v2327 = vmul.f32 %v2271, %v2302
    %v2328 = vmul.f32 %v2272, %v2307
    %v2329 = vmul.f32 %v2273, %v2292
    %v2330 = vmul.f32 %v2274, %v2297
    %v2331 = vmul.f32 %v2275, %v2302
    %v2332 = vmul.f32 %v2276, %v2307
    %v2333 = vmul.f32 %v2277, %v2292
    %v2334 = vmul.f32 %v2278, %v2297
    %v2335 = vmul.f32 %v2279, %v2302
    %v2336 = vmul.f32 %v2280, %v2307
    %v2337 = vmul.f32 %v2281, %v2292
    %v2338 = vmul.f32 %v2282, %v2297
    %v2339 = vmul.f32 %v2283, %v2302
    %v2340 = vmul.f32 %v2284, %v2307
    %v2341 = vsel %vm750, %v2309, 0.0
    %v2342 = vsel %vm750, %v2310, 0.0
    %v2343 = vadd.f32 %v2341, %v2342
    %v2344 = vsel %vm750, %v2311, 0.0
    %v2345 = vadd.f32 %v2343, %v2344
    %v2346 = vsel %vm750, %v2312, 0.0
    %v2347 = vadd.f32 %v2345, %v2346
    %v2348 = vrot.slane %v2347, 4
    %v2349 = vadd.f32 %v2347, %v2348
    %v2350 = vrot.slane %v2349, 2
    %v2351 = vadd.f32 %v2349, %v2350
    %v2352 = vrot.slane %v2351, 1
    %v2353 = vadd.f32 %v2351, %v2352
    %v2354 = vsel %vm750, %v2313, 0.0
    %v2355 = vsel %vm750, %v2314, 0.0
    %v2356 = vadd.f32 %v2354, %v2355
    %v2357 = vsel %vm750, %v2315, 0.0
    %v2358 = vadd.f32 %v2356, %v2357
    %v2359 = vsel %vm750, %v2316, 0.0
    %v2360 = vadd.f32 %v2358, %v2359
    %v2361 = vrot.slane %v2360, 4
    %v2362 = vadd.f32 %v2360, %v2361
    %v2363 = vrot.slane %v2362, 2
    %v2364 = vadd.f32 %v2362, %v2363
    %v2365 = vrot.slane %v2364, 1
    %v2366 = vadd.f32 %v2364, %v2365
    %v2367 = vsel %vm750, %v2317, 0.0
    %v2368 = vsel %vm750, %v2318, 0.0
    %v2369 = vadd.f32 %v2367, %v2368
    %v2370 = vsel %vm750, %v2319, 0.0
    %v2371 = vadd.f32 %v2369, %v2370
    %v2372 = vsel %vm750, %v2320, 0.0
    %v2373 = vadd.f32 %v2371, %v2372
    %v2374 = vrot.slane %v2373, 4
    %v2375 = vadd.f32 %v2373, %v2374
    %v2376 = vrot.slane %v2375, 2
    %v2377 = vadd.f32 %v2375, %v2376
    %v2378 = vrot.slane %v2377, 1
    %v2379 = vadd.f32 %v2377, %v2378
    %v2380 = vsel %vm750, %v2321, 0.0
    %v2381 = vsel %vm750, %v2322, 0.0
    %v2382 = vadd.f32 %v2380, %v2381
    %v2383 = vsel %vm750, %v2323, 0.0
    %v2384 = vadd.f32 %v2382, %v2383
    %v2385 = vsel %vm750, %v2324, 0.0
    %v2386 = vadd.f32 %v2384, %v2385
    %v2387 = vrot.slane %v2386, 4
    %v2388 = vadd.f32 %v2386, %v2387
    %v2389 = vrot.slane %v2388, 2
    %v2390 = vadd.f32 %v2388, %v2389
    %v2391 = vrot.slane %v2390, 1
    %v2392 = vadd.f32 %v2390, %v2391
    %v2393 = vsel %vm750, %v2325, 0.0
    %v2394 = vsel %vm750, %v2326, 0.0
    %v2395 = vadd.f32 %v2393, %v2394
    %v2396 = vsel %vm750, %v2327, 0.0
    %v2397 = vadd.f32 %v2395, %v2396
    %v2398 = vsel %vm750, %v2328, 0.0
    %v2399 = vadd.f32 %v2397, %v2398
    %v2400 = vrot.slane %v2399, 4
    %v2401 = vadd.f32 %v2399, %v2400
    %v2402 = vrot.slane %v2401, 2
    %v2403 = vadd.f32 %v2401, %v2402
    %v2404 = vrot.slane %v2403, 1
    %v2405 = vadd.f32 %v2403, %v2404
    %v2406 = vsel %vm750, %v2329, 0.0
    %v2407 = vsel %vm750, %v2330, 0.0
    %v2408 = vadd.f32 %v2406, %v2407
    %v2409 = vsel %vm750, %v2331, 0.0
    %v2410 = vadd.f32 %v2408, %v2409
    %v2411 = vsel %vm750, %v2332, 0.0
    %v2412 = vadd.f32 %v2410, %v2411
    %v2413 = vrot.slane %v2412, 4
    %v2414 = vadd.f32 %v2412, %v2413
    %v2415 = vrot.slane %v2414, 2
    %v2416 = vadd.f32 %v2414, %v2415
    %v2417 = vrot.slane %v2416, 1
    %v2418 = vadd.f32 %v2416, %v2417
    %v2419 = vsel %vm750, %v2333, 0.0
    %v2420 = vsel %vm750, %v2334, 0.0
    %v2421 = vadd.f32 %v2419, %v2420
    %v2422 = vsel %vm750, %v2335, 0.0
    %v2423 = vadd.f32 %v2421, %v2422
    %v2424 = vsel %vm750, %v2336, 0.0
    %v2425 = vadd.f32 %v2423, %v2424
    %v2426 = vrot.slane %v2425, 4
    %v2427 = vadd.f32 %v2425, %v2426
    %v2428 = vrot.slane %v2427, 2
    %v2429 = vadd.f32 %v2427, %v2428
    %v2430 = vrot.slane %v2429, 1
    %v2431 = vadd.f32 %v2429, %v2430
    %v2432 = vsel %vm750, %v2337, 0.0
    %v2433 = vsel %vm750, %v2338, 0.0
    %v2434 = vadd.f32 %v2432, %v2433
    %v2435 = vsel %vm750, %v2339, 0.0
    %v2436 = vadd.f32 %v2434, %v2435
    %v2437 = vsel %vm750, %v2340, 0.0
    %v2438 = vadd.f32 %v2436, %v2437
    %v2439 = vrot.slane %v2438, 4
    %v2440 = vadd.f32 %v2438, %v2439
    %v2441 = vrot.slane %v2440, 2
    %v2442 = vadd.f32 %v2440, %v2441
    %v2443 = vrot.slane %v2442, 1
    %v2444 = vadd.f32 %v2442, %v2443
    %s2445 = sld [smem:[#allocation3]]
    %v2446 = vstv %s2445
    %v2447 = vadd.f32 %v2353, %v2446
    %v2448 = vadd.f32 %v2366, %v2446
    %v2449 = vadd.f32 %v2379, %v2446
    %v2450 = vadd.f32 %v2392, %v2446
    %v2451 = vadd.f32 %v2405, %v2446
    %v2452 = vadd.f32 %v2418, %v2446
    %v2453 = vadd.f32 %v2431, %v2446
    %v2454 = vadd.f32 %v2444, %v2446
    %v2455 = vxor.u32 %v2447, 2147483648
    %v2456 = vxor.u32 %v2448, 2147483648
    %v2457 = vxor.u32 %v2449, 2147483648
    %v2458 = vxor.u32 %v2450, 2147483648
    %v2459 = vxor.u32 %v2451, 2147483648
    %v2460 = vxor.u32 %v2452, 2147483648
    %v2461 = vxor.u32 %v2453, 2147483648
    %v2462 = vxor.u32 %v2454, 2147483648
    %v2463 = vmul.f32 %v2455, 1.442695
    %v2464 = vpow.pop %v2463
    %v2465 = vmul.f32 %v2456, 1.442695
    %v2466 = vpow.pop %v2465
    %v2467 = vmul.f32 %v2457, 1.442695
    %v2468 = vpow.pop %v2467
    %v2469 = vmul.f32 %v2458, 1.442695
    %v2470 = vpow.pop %v2469
    %v2471 = vmul.f32 %v2459, 1.442695
    %v2472 = vpow.pop %v2471
    %v2473 = vmul.f32 %v2460, 1.442695
    %v2474 = vpow.pop %v2473
    %v2475 = vmul.f32 %v2461, 1.442695
    %v2476 = vpow.pop %v2475
    %v2477 = vmul.f32 %v2462, 1.442695
    %v2478 = vpow.pop %v2477
    %v2479 = vadd.f32 %v2464, 1.0
    %v2480 = vadd.f32 %v2466, 1.0
    %v2481 = vadd.f32 %v2468, 1.0
    %v2482 = vadd.f32 %v2470, 1.0
    %v2483 = vadd.f32 %v2472, 1.0
    %v2484 = vadd.f32 %v2474, 1.0
    %v2485 = vadd.f32 %v2476, 1.0
    %v2486 = vadd.f32 %v2478, 1.0
    %v2487 = vrcp.pop %v2479
    %v2488 = vmul.f32 1.0, %v2487
    %v2489 = vrcp.pop %v2480
    %v2490 = vmul.f32 1.0, %v2489
    %v2491 = vrcp.pop %v2481
    %v2492 = vmul.f32 1.0, %v2491
    %v2493 = vrcp.pop %v2482
    %v2494 = vmul.f32 1.0, %v2493
    %v2495 = vrcp.pop %v2483
    %v2496 = vmul.f32 1.0, %v2495
    %v2497 = vrcp.pop %v2484
    %v2498 = vmul.f32 1.0, %v2497
    %v2499 = vrcp.pop %v2485
    %v2500 = vmul.f32 1.0, %v2499
    %v2501 = vrcp.pop %v2486
    %v2502 = vmul.f32 1.0, %v2501
    %vm2511 = vcmask 1041409
    %v2512 = vsel %vm2511, %v2490, %v2488
    %vm2513 = vcmask 1042434
    %v2514 = vsel %vm2513, %v2492, %v2512
    %vm2515 = vcmask 1043459
    %v2516 = vsel %vm2515, %v2494, %v2514
    %vm2517 = vcmask 1044484
    %v2518 = vsel %vm2517, %v2496, %v2516
    %vm2519 = vcmask 1045509
    %v2520 = vsel %vm2519, %v2498, %v2518
    %vm2521 = vcmask 1046534
    %v2522 = vsel %vm2521, %v2500, %v2520
    %vm2523 = vcmask 1047559
    %v2524 = vsel %vm2523, %v2502, %v2522
    %2526 = vst.msk [vmem:[#allocation4] sm:$0xff] %vm750, %v2524
    // Predicated region
    $region30: #{tpu_custom_call.1} parent=1 // pred_check
      _
    $region31: #{tpu_custom_call.1} parent=1 // pred_check_branch
      %2528 = sbr.rel (0) target = $region33
    $region32: #{tpu_custom_call.1} parent=1 // pred_region
      %s2530 = ssub.s32 128, 128
      %2531 = vsyncadd [#allocation5], %s2530
      %s2533 = sshll.u32 [#allocation4], 4
      %s2534 = int_to_ptr.vmem [resolvable:$true] %s2533
      %2536 = dma.vmem_to_hbm [thread:$0]  %s2534, 128, %s7, [#allocation5]
    $region33: #{tpu_custom_call.1} parent=1 // pred_fallthru
      _
    // Predicated region
    $region34: #{tpu_custom_call.1} parent=1 // pred_check
      _
    $region35: #{tpu_custom_call.1} parent=1 // pred_check_branch
      %2538 = sbr.rel (0) target = $region37
    $region36: #{tpu_custom_call.1} parent=1 // pred_region
      %2539 = dma.done [#allocation5], 128
    $region37: #{tpu_custom_call.1} parent=1 // pred_fallthru
      _
    %2540 = vsyncpa [#allocation5], 1

</llo_original>
